<compile_context>
chip_gen: v6e
topology: v6e:2x2x1
jax: 0.10.0
libtpu: 0.0.40
codegen_flags: <defaults>
</compile_context>

<pallas_src>
import functools
import math

import jax
import jax.numpy as jnp
from jax.experimental import pallas as pl
from jax.experimental.pallas import tpu as pltpu


def _round_up(x, m):
    return ((x + m - 1) // m) * m


def _sab_kernel(x_ref, wqkv_ref, bqkv_ref, wsel_ref, wo_ref, bo_ref, out_ref,
                *, num_heads, ds_pad, dv_pad, dim_in, block_b, seq_n):
    bt, n, H = block_b, seq_n, num_heads
    hdp = H * ds_pad
    cdt = x_ref.dtype

    # ---- fused QKV projection over all bt*n rows: one wide MXU matmul with
    # f32 accumulation, cast straight back to the compute dtype so every later
    # MXU operand (and the live intermediate) stays narrow.
    x2d = x_ref[...].reshape(bt * n, dim_in)
    qkv = (jnp.dot(x2d, wqkv_ref[...], preferred_element_type=jnp.float32)
           + bqkv_ref[...]).astype(cdt)

    q3 = qkv[:, 0 * hdp:1 * hdp].reshape(bt, n, hdp)
    k3 = qkv[:, 1 * hdp:2 * hdp].reshape(bt, n, hdp)   # pre-scaled by 1/sqrt(dim_V)
    v3 = qkv[:, 2 * hdp:3 * hdp].reshape(bt, n, hdp)

    # ---- per-head attention.  Heads occupy ds_pad-wide (multiple-of-128)
    # column blocks, so every slice below is a lane-aligned zero-cost view; the
    # zero pad columns contribute nothing to the scores and stay zero through
    # PV and the Q residual.  Head outputs stay in registers and are
    # concatenated once (aligned) -- no masked scratch stores / reload.
    head_out = []
    for h in range(H):                                   # static unroll, H small
        lo = h * ds_pad
        qh = q3[:, :, lo:lo + ds_pad]
        kh = k3[:, :, lo:lo + ds_pad]
        vh = v3[:, :, lo:lo + ds_pad]
        s = jnp.einsum('bnd,bmd->bnm', qh, kh,
                       preferred_element_type=jnp.float32)
        s = s - jnp.max(s, axis=-1, keepdims=True)        # stable softmax
        p = jnp.exp(s)
        inv = pl.reciprocal(jnp.sum(p, axis=-1, keepdims=True), approx=True)
        pv = jnp.einsum('bnm,bmd->bnd', (p * inv).astype(cdt), vh,
                        preferred_element_type=jnp.float32)
        head_out.append(qh + pv.astype(cdt))
    o_pad = jnp.concatenate(head_out, axis=-1).reshape(bt * n, hdp)

    # ---- O -> O + relu(fc_o(O)).  wsel compacts the padded head layout back
    # to the (padded) dim_V columns as a 0/1 gather done on the MXU; wo_ref is
    # the fc_o weight with its rows pre-scattered into the padded layout.  Both
    # results are dv_pad (>=128) wide, so the final store is fully lane-dense.
    o_c = jnp.dot(o_pad, wsel_ref[...], preferred_element_type=jnp.float32)
    ff = jnp.dot(o_pad, wo_ref[...], preferred_element_type=jnp.float32) + bo_ref[...]
    out2 = o_c + jnp.maximum(ff, 0.0)

    out_ref[...] = out2.reshape(bt, n, dv_pad).astype(out_ref.dtype)


def _vmem_limit_bytes():
    """Generation-aware VMEM ceiling: ~3/4 of physical VMEM (~48 MiB on v7x's
    64 MiB, 96 MiB on v5e/v6e's 128 MiB), leaving headroom for compiler
    scratch / spills."""
    try:
        cap = pltpu.get_tpu_info().vmem_capacity_bytes
    except Exception:
        cap = 64 * 1024 * 1024
    return int(min(cap * 3 // 4, 96 * 1024 * 1024))


def _pick_block_b(B, N, dim_in, dv_pad, hdp, itemsize, vmem_budget):
    """Batch-tile size: aim for ~512 rows (block_b*N) per grid step (per-step
    overhead amortization / mem-bound roofline), capped by a rough VMEM
    estimate so the tile fits the generation's budget."""
    target = max(1, 512 // N)
    divisors = [d for d in range(1, B + 1) if B % d == 0]

    def est_bytes(d):
        rows = d * N
        tiles = 2 * rows * (dim_in + dv_pad) * itemsize            # dbl-buffered in/out
        weights = 2 * (dim_in * 3 * hdp + 2 * hdp * dv_pad + 4 * hdp) * itemsize
        inter = 4 * rows * hdp * itemsize + rows * N * 4           # qkv + o_pad + f32 scores
        return tiles + weights + inter

    fitting = [d for d in divisors if est_bytes(d) <= vmem_budget] or [1]
    under = [d for d in fitting if d <= target]
    return max(under) if under else min(fitting)


def sab_forward(x, params, num_heads, block_b=None):
    B, N, dim_in = x.shape
    dim_V = params["wq"].shape[0]
    assert dim_V % num_heads == 0, "dim_V must be divisible by num_heads"
    ds = dim_V // num_heads
    ds_pad = _round_up(ds, 128)          # per-head lane alignment
    hdp = num_heads * ds_pad
    dv_pad = _round_up(dim_V, 128)       # lane-dense output slab
    cdt = x.dtype
    itemsize = jnp.dtype(cdt).itemsize

    vmem_limit = _vmem_limit_bytes()
    if block_b is None:
        block_b = _pick_block_b(B, N, dim_in, dv_pad, hdp, itemsize, vmem_limit)
    assert B % block_b == 0
    nb = B // block_b

    scale = 1.0 / math.sqrt(dim_V)       # folded into K (Q stays unscaled: residual)

    def pad_head_cols(w_t, b, s=1.0):
        # (rows, dim_V) weight / (dim_V,) bias -> head columns padded to ds_pad.
        rows = w_t.shape[0]
        wp = jnp.pad((w_t * s).reshape(rows, num_heads, ds),
                     ((0, 0), (0, 0), (0, ds_pad - ds))).reshape(rows, hdp)
        bp = jnp.pad((b * s).reshape(num_heads, ds),
                     ((0, 0), (0, ds_pad - ds))).reshape(1, hdp)
        return wp, bp

    wq_p, bq_p = pad_head_cols(params["wq"].T, params["bq"])
    wk_p, bk_p = pad_head_cols(params["wk"].T, params["bk"], scale)
    wv_p, bv_p = pad_head_cols(params["wv"].T, params["bv"])
    w_qkv = jnp.concatenate([wq_p, wk_p, wv_p], axis=1).astype(cdt)   # (dim_in, 3*hdp)
    b_qkv = jnp.concatenate([bq_p, bk_p, bv_p], axis=1).astype(cdt)   # (1, 3*hdp)

    def scatter_rows(m):
        # (dim_V, C) -> (hdp, C): row h*ds+j goes to row h*ds_pad+j, pad rows zero.
        c = m.shape[1]
        return jnp.pad(m.reshape(num_heads, ds, c),
                       ((0, 0), (0, ds_pad - ds), (0, 0))).reshape(hdp, c)

    pad_out = ((0, 0), (0, dv_pad - dim_V))
    w_sel = jnp.pad(scatter_rows(jnp.eye(dim_V, dtype=jnp.float32)), pad_out).astype(cdt)
    w_o = jnp.pad(scatter_rows(params["wo"].T), pad_out).astype(cdt)
    b_o = jnp.pad(params["bo"].reshape(1, dim_V), pad_out).astype(cdt)

    kernel = functools.partial(
        _sab_kernel, num_heads=num_heads, ds_pad=ds_pad, dv_pad=dv_pad,
        dim_in=dim_in, block_b=block_b, seq_n=N)

    const = lambda shape: pl.BlockSpec(shape, lambda b, _s=None: (0,) * len(shape))

    out_pad = pl.pallas_call(
        kernel,
        out_shape=jax.ShapeDtypeStruct((B, N, dv_pad), x.dtype),
        grid=(nb,),
        in_specs=[
            pl.BlockSpec((block_b, N, dim_in), lambda b: (b, 0, 0)),  # X batch-tile
            const((dim_in, 3 * hdp)),   # fused, head-padded Wqkv (grid-invariant)
            const((1, 3 * hdp)),        # fused bqkv
            const((hdp, dv_pad)),       # head-compaction (0/1 selection) matrix
            const((hdp, dv_pad)),       # fc_o weight, rows scattered to padded layout
            const((1, dv_pad)),         # fc_o bias, output-padded
        ],
        out_specs=pl.BlockSpec((block_b, N, dv_pad), lambda b: (b, 0, 0)),
        compiler_params=pltpu.CompilerParams(
            dimension_semantics=("parallel",),
            vmem_limit_bytes=vmem_limit),
    )(x, w_qkv, b_qkv, w_sel, w_o, b_o)

    return out_pad[..., :dim_V] if dv_pad != dim_V else out_pad


def _init_linear(key, fan_in, fan_out):
    # Deterministic init mimicking torch.nn.Linear (uniform +/- 1/sqrt(fan_in)).
    kw, kb = jax.random.split(key)
    bound = 1.0 / math.sqrt(fan_in)
    w = jax.random.uniform(kw, (fan_out, fan_in), jnp.float32, -bound, bound)
    b = jax.random.uniform(kb, (fan_out,), jnp.float32, -bound, bound)
    return w, b


def _sab_reference(x, params, num_heads):
    # Pure-JAX reference mirroring the PyTorch forward exactly (ln=False).
    dim_V = params["wq"].shape[0]
    q = x @ params["wq"].T + params["bq"]
    k = x @ params["wk"].T + params["bk"]
    v = x @ params["wv"].T + params["bv"]
    q_ = jnp.concatenate(jnp.split(q, num_heads, axis=2), axis=0)
    k_ = jnp.concatenate(jnp.split(k, num_heads, axis=2), axis=0)
    v_ = jnp.concatenate(jnp.split(v, num_heads, axis=2), axis=0)
    a = jax.nn.softmax(jnp.einsum("bnd,bmd->bnm", q_, k_) / math.sqrt(dim_V), axis=2)
    o = q_ + jnp.einsum("bnm,bmd->bnd", a, v_)
    o = jnp.concatenate(jnp.split(o, num_heads, axis=0), axis=2)
    o = o + jax.nn.relu(o @ params["wo"].T + params["bo"])
    return o


if __name__ == "__main__":
    B, N, dim_in, dim_out, num_heads = 2, 8, 32, 32, 4

    root = jax.random.PRNGKey(0)
    kx, kq, kk, kv, ko = jax.random.split(root, 5)

    x = jax.random.normal(kx, (B, N, dim_in), jnp.float32)

    wq, bq = _init_linear(kq, dim_in, dim_out)
    wk, bk = _init_linear(kk, dim_in, dim_out)
    wv, bv = _init_linear(kv, dim_in, dim_out)
    wo, bo = _init_linear(ko, dim_out, dim_out)
    params = dict(wq=wq, bq=bq, wk=wk, bk=bk, wv=wv, bv=bv, wo=wo, bo=bo)

    out = sab_forward(x, params, num_heads)
    out = jax.block_until_ready(out)

    ref = _sab_reference(x, params, num_heads)
    assert out.shape == (B, N, dim_out)
    assert jnp.allclose(out, ref, rtol=1e-2, atol=2e-3), "mismatch vs JAX reference"

    print("KERNEL_OK")
</pallas_src>

<mosaic_0001>
module attributes {stable_mosaic.version = 11 : i64} {
  func.func @_sab_kernel(%arg0: i32, %arg1: memref<2x8x32xf32, #tpu.memory_space<vmem>>, %arg2: memref<32x1536xf32, #tpu.memory_space<vmem>>, %arg3: memref<1x1536xf32, #tpu.memory_space<vmem>>, %arg4: memref<512x128xf32, #tpu.memory_space<vmem>>, %arg5: memref<512x128xf32, #tpu.memory_space<vmem>>, %arg6: memref<1x128xf32, #tpu.memory_space<vmem>>, %arg7: memref<2x8x128xf32, #tpu.memory_space<vmem>>) attributes {dimension_semantics = [#tpu.dimension_semantics<parallel>], iteration_bounds = array<i64: 1>, scalar_prefetch = 0 : i64, scratch_operands = 0 : i64, tpu.core_type = #tpu.core_type<tc>, window_params = [{transform_indices = @transform_0, window_bounds = array<i64: 2, 8, 32>}, {pipeline_mode = #tpu.pipeline_mode<synchronous>, transform_indices = @transform_1, window_bounds = array<i64: 32, 1536>}, {pipeline_mode = #tpu.pipeline_mode<synchronous>, transform_indices = @transform_2, window_bounds = array<i64: 1, 1536>}, {pipeline_mode = #tpu.pipeline_mode<synchronous>, transform_indices = @transform_3, window_bounds = array<i64: 512, 128>}, {pipeline_mode = #tpu.pipeline_mode<synchronous>, transform_indices = @transform_4, window_bounds = array<i64: 512, 128>}, {pipeline_mode = #tpu.pipeline_mode<synchronous>, transform_indices = @transform_5, window_bounds = array<i64: 1, 128>}, {transform_indices = @transform_6, window_bounds = array<i64: 2, 8, 128>}]} {
    %c0 = arith.constant 0 : index
    %c0_0 = arith.constant 0 : index
    %c0_1 = arith.constant 0 : index
    %0 = vector.load %arg1[%c0, %c0_0, %c0_1] : memref<2x8x32xf32, #tpu.memory_space<vmem>>, vector<2x8x32xf32>
    %1 = vector.shape_cast %0 : vector<2x8x32xf32> to vector<16x32xf32>
    %c0_2 = arith.constant 0 : index
    %c0_3 = arith.constant 0 : index
    %2 = vector.load %arg2[%c0_2, %c0_3] : memref<32x1536xf32, #tpu.memory_space<vmem>>, vector<32x1536xf32>
    %cst = arith.constant dense<0.000000e+00> : vector<16x1536xf32>
    %3 = tpu.matmul %1, %2, %cst {dimension_numbers = #tpu.dot_dimension_numbers<[1], [0], [0], [1], [0, 0, 1, 1], [], []>} : vector<16x32xf32>, vector<32x1536xf32>, vector<16x1536xf32> -> vector<16x1536xf32>
    %c0_4 = arith.constant 0 : index
    %c0_5 = arith.constant 0 : index
    %4 = vector.load %arg3[%c0_4, %c0_5] : memref<1x1536xf32, #tpu.memory_space<vmem>>, vector<1x1536xf32>
    %5 = vector.broadcast %4 : vector<1x1536xf32> to vector<16x1536xf32>
    %6 = arith.addf %3, %5 : vector<16x1536xf32>
    %7 = vector.extract_strided_slice %6 {offsets = [0, 0], sizes = [16, 512], strides = [1, 1]} : vector<16x1536xf32> to vector<16x512xf32>
    %8 = vector.shape_cast %7 : vector<16x512xf32> to vector<2x8x512xf32>
    %9 = vector.extract_strided_slice %6 {offsets = [0, 512], sizes = [16, 512], strides = [1, 1]} : vector<16x1536xf32> to vector<16x512xf32>
    %10 = vector.shape_cast %9 : vector<16x512xf32> to vector<2x8x512xf32>
    %11 = vector.extract_strided_slice %6 {offsets = [0, 1024], sizes = [16, 512], strides = [1, 1]} : vector<16x1536xf32> to vector<16x512xf32>
    %12 = vector.shape_cast %11 : vector<16x512xf32> to vector<2x8x512xf32>
    %13 = vector.extract_strided_slice %8 {offsets = [0, 0, 0], sizes = [2, 8, 128], strides = [1, 1, 1]} : vector<2x8x512xf32> to vector<2x8x128xf32>
    %14 = vector.extract_strided_slice %10 {offsets = [0, 0, 0], sizes = [2, 8, 128], strides = [1, 1, 1]} : vector<2x8x512xf32> to vector<2x8x128xf32>
    %15 = vector.extract_strided_slice %12 {offsets = [0, 0, 0], sizes = [2, 8, 128], strides = [1, 1, 1]} : vector<2x8x512xf32> to vector<2x8x128xf32>
    "tpu.trace_start"() <{level = 10 : i32, message = "bnd,bmd->bnm"}> : () -> ()
    %cst_6 = arith.constant dense<0.000000e+00> : vector<2x8x8xf32>
    %16 = tpu.matmul %13, %14, %cst_6 {dimension_numbers = #tpu.dot_dimension_numbers<[2], [2], [1], [1], [0, 0, 0, 1, 1, 1], [0], [0]>} : vector<2x8x128xf32>, vector<2x8x128xf32>, vector<2x8x8xf32> -> vector<2x8x8xf32>
    "tpu.trace_stop"() : () -> ()
    %cst_7 = arith.constant dense<0xFF800000> : vector<2x8xf32>
    %17 = vector.multi_reduction <maximumf>, %16, %cst_7 [2] : vector<2x8x8xf32> to vector<2x8xf32>
    %18 = vector.shape_cast %17 : vector<2x8xf32> to vector<2x8x1xf32>
    %19 = vector.broadcast %18 : vector<2x8x1xf32> to vector<2x8x8xf32>
    %20 = arith.subf %16, %19 : vector<2x8x8xf32>
    %21 = math.exp %20 : vector<2x8x8xf32>
    %cst_8 = arith.constant dense<0.000000e+00> : vector<2x8xf32>
    %22 = vector.multi_reduction <add>, %21, %cst_8 [2] : vector<2x8x8xf32> to vector<2x8xf32>
    %23 = vector.shape_cast %22 : vector<2x8xf32> to vector<2x8x1xf32>
    %24 = tpu.reciprocal %23 {approx = true} : vector<2x8x1xf32> -> vector<2x8x1xf32>
    %25 = vector.broadcast %24 : vector<2x8x1xf32> to vector<2x8x8xf32>
    %26 = arith.mulf %21, %25 : vector<2x8x8xf32>
    "tpu.trace_start"() <{level = 10 : i32, message = "bnm,bmd->bnd"}> : () -> ()
    %cst_9 = arith.constant dense<0.000000e+00> : vector<2x8x128xf32>
    %27 = tpu.matmul %26, %15, %cst_9 {dimension_numbers = #tpu.dot_dimension_numbers<[2], [1], [1], [2], [0, 0, 0, 1, 1, 2], [0], [0]>} : vector<2x8x8xf32>, vector<2x8x128xf32>, vector<2x8x128xf32> -> vector<2x8x128xf32>
    "tpu.trace_stop"() : () -> ()
    %28 = arith.addf %13, %27 : vector<2x8x128xf32>
    %29 = vector.extract_strided_slice %8 {offsets = [0, 0, 128], sizes = [2, 8, 128], strides = [1, 1, 1]} : vector<2x8x512xf32> to vector<2x8x128xf32>
    %30 = vector.extract_strided_slice %10 {offsets = [0, 0, 128], sizes = [2, 8, 128], strides = [1, 1, 1]} : vector<2x8x512xf32> to vector<2x8x128xf32>
    %31 = vector.extract_strided_slice %12 {offsets = [0, 0, 128], sizes = [2, 8, 128], strides = [1, 1, 1]} : vector<2x8x512xf32> to vector<2x8x128xf32>
    "tpu.trace_start"() <{level = 10 : i32, message = "bnd,bmd->bnm"}> : () -> ()
    %cst_10 = arith.constant dense<0.000000e+00> : vector<2x8x8xf32>
    %32 = tpu.matmul %29, %30, %cst_10 {dimension_numbers = #tpu.dot_dimension_numbers<[2], [2], [1], [1], [0, 0, 0, 1, 1, 1], [0], [0]>} : vector<2x8x128xf32>, vector<2x8x128xf32>, vector<2x8x8xf32> -> vector<2x8x8xf32>
    "tpu.trace_stop"() : () -> ()
    %cst_11 = arith.constant dense<0xFF800000> : vector<2x8xf32>
    %33 = vector.multi_reduction <maximumf>, %32, %cst_11 [2] : vector<2x8x8xf32> to vector<2x8xf32>
    %34 = vector.shape_cast %33 : vector<2x8xf32> to vector<2x8x1xf32>
    %35 = vector.broadcast %34 : vector<2x8x1xf32> to vector<2x8x8xf32>
    %36 = arith.subf %32, %35 : vector<2x8x8xf32>
    %37 = math.exp %36 : vector<2x8x8xf32>
    %cst_12 = arith.constant dense<0.000000e+00> : vector<2x8xf32>
    %38 = vector.multi_reduction <add>, %37, %cst_12 [2] : vector<2x8x8xf32> to vector<2x8xf32>
    %39 = vector.shape_cast %38 : vector<2x8xf32> to vector<2x8x1xf32>
    %40 = tpu.reciprocal %39 {approx = true} : vector<2x8x1xf32> -> vector<2x8x1xf32>
    %41 = vector.broadcast %40 : vector<2x8x1xf32> to vector<2x8x8xf32>
    %42 = arith.mulf %37, %41 : vector<2x8x8xf32>
    "tpu.trace_start"() <{level = 10 : i32, message = "bnm,bmd->bnd"}> : () -> ()
    %cst_13 = arith.constant dense<0.000000e+00> : vector<2x8x128xf32>
    %43 = tpu.matmul %42, %31, %cst_13 {dimension_numbers = #tpu.dot_dimension_numbers<[2], [1], [1], [2], [0, 0, 0, 1, 1, 2], [0], [0]>} : vector<2x8x8xf32>, vector<2x8x128xf32>, vector<2x8x128xf32> -> vector<2x8x128xf32>
    "tpu.trace_stop"() : () -> ()
    %44 = arith.addf %29, %43 : vector<2x8x128xf32>
    %45 = vector.extract_strided_slice %8 {offsets = [0, 0, 256], sizes = [2, 8, 128], strides = [1, 1, 1]} : vector<2x8x512xf32> to vector<2x8x128xf32>
    %46 = vector.extract_strided_slice %10 {offsets = [0, 0, 256], sizes = [2, 8, 128], strides = [1, 1, 1]} : vector<2x8x512xf32> to vector<2x8x128xf32>
    %47 = vector.extract_strided_slice %12 {offsets = [0, 0, 256], sizes = [2, 8, 128], strides = [1, 1, 1]} : vector<2x8x512xf32> to vector<2x8x128xf32>
    "tpu.trace_start"() <{level = 10 : i32, message = "bnd,bmd->bnm"}> : () -> ()
    %cst_14 = arith.constant dense<0.000000e+00> : vector<2x8x8xf32>
    %48 = tpu.matmul %45, %46, %cst_14 {dimension_numbers = #tpu.dot_dimension_numbers<[2], [2], [1], [1], [0, 0, 0, 1, 1, 1], [0], [0]>} : vector<2x8x128xf32>, vector<2x8x128xf32>, vector<2x8x8xf32> -> vector<2x8x8xf32>
    "tpu.trace_stop"() : () -> ()
    %cst_15 = arith.constant dense<0xFF800000> : vector<2x8xf32>
    %49 = vector.multi_reduction <maximumf>, %48, %cst_15 [2] : vector<2x8x8xf32> to vector<2x8xf32>
    %50 = vector.shape_cast %49 : vector<2x8xf32> to vector<2x8x1xf32>
    %51 = vector.broadcast %50 : vector<2x8x1xf32> to vector<2x8x8xf32>
    %52 = arith.subf %48, %51 : vector<2x8x8xf32>
    %53 = math.exp %52 : vector<2x8x8xf32>
    %cst_16 = arith.constant dense<0.000000e+00> : vector<2x8xf32>
    %54 = vector.multi_reduction <add>, %53, %cst_16 [2] : vector<2x8x8xf32> to vector<2x8xf32>
    %55 = vector.shape_cast %54 : vector<2x8xf32> to vector<2x8x1xf32>
    %56 = tpu.reciprocal %55 {approx = true} : vector<2x8x1xf32> -> vector<2x8x1xf32>
    %57 = vector.broadcast %56 : vector<2x8x1xf32> to vector<2x8x8xf32>
    %58 = arith.mulf %53, %57 : vector<2x8x8xf32>
    "tpu.trace_start"() <{level = 10 : i32, message = "bnm,bmd->bnd"}> : () -> ()
    %cst_17 = arith.constant dense<0.000000e+00> : vector<2x8x128xf32>
    %59 = tpu.matmul %58, %47, %cst_17 {dimension_numbers = #tpu.dot_dimension_numbers<[2], [1], [1], [2], [0, 0, 0, 1, 1, 2], [0], [0]>} : vector<2x8x8xf32>, vector<2x8x128xf32>, vector<2x8x128xf32> -> vector<2x8x128xf32>
    "tpu.trace_stop"() : () -> ()
    %60 = arith.addf %45, %59 : vector<2x8x128xf32>
    %61 = vector.extract_strided_slice %8 {offsets = [0, 0, 384], sizes = [2, 8, 128], strides = [1, 1, 1]} : vector<2x8x512xf32> to vector<2x8x128xf32>
    %62 = vector.extract_strided_slice %10 {offsets = [0, 0, 384], sizes = [2, 8, 128], strides = [1, 1, 1]} : vector<2x8x512xf32> to vector<2x8x128xf32>
    %63 = vector.extract_strided_slice %12 {offsets = [0, 0, 384], sizes = [2, 8, 128], strides = [1, 1, 1]} : vector<2x8x512xf32> to vector<2x8x128xf32>
    "tpu.trace_start"() <{level = 10 : i32, message = "bnd,bmd->bnm"}> : () -> ()
    %cst_18 = arith.constant dense<0.000000e+00> : vector<2x8x8xf32>
    %64 = tpu.matmul %61, %62, %cst_18 {dimension_numbers = #tpu.dot_dimension_numbers<[2], [2], [1], [1], [0, 0, 0, 1, 1, 1], [0], [0]>} : vector<2x8x128xf32>, vector<2x8x128xf32>, vector<2x8x8xf32> -> vector<2x8x8xf32>
    "tpu.trace_stop"() : () -> ()
    %cst_19 = arith.constant dense<0xFF800000> : vector<2x8xf32>
    %65 = vector.multi_reduction <maximumf>, %64, %cst_19 [2] : vector<2x8x8xf32> to vector<2x8xf32>
    %66 = vector.shape_cast %65 : vector<2x8xf32> to vector<2x8x1xf32>
    %67 = vector.broadcast %66 : vector<2x8x1xf32> to vector<2x8x8xf32>
    %68 = arith.subf %64, %67 : vector<2x8x8xf32>
    %69 = math.exp %68 : vector<2x8x8xf32>
    %cst_20 = arith.constant dense<0.000000e+00> : vector<2x8xf32>
    %70 = vector.multi_reduction <add>, %69, %cst_20 [2] : vector<2x8x8xf32> to vector<2x8xf32>
    %71 = vector.shape_cast %70 : vector<2x8xf32> to vector<2x8x1xf32>
    %72 = tpu.reciprocal %71 {approx = true} : vector<2x8x1xf32> -> vector<2x8x1xf32>
    %73 = vector.broadcast %72 : vector<2x8x1xf32> to vector<2x8x8xf32>
    %74 = arith.mulf %69, %73 : vector<2x8x8xf32>
    "tpu.trace_start"() <{level = 10 : i32, message = "bnm,bmd->bnd"}> : () -> ()
    %cst_21 = arith.constant dense<0.000000e+00> : vector<2x8x128xf32>
    %75 = tpu.matmul %74, %63, %cst_21 {dimension_numbers = #tpu.dot_dimension_numbers<[2], [1], [1], [2], [0, 0, 0, 1, 1, 2], [0], [0]>} : vector<2x8x8xf32>, vector<2x8x128xf32>, vector<2x8x128xf32> -> vector<2x8x128xf32>
    "tpu.trace_stop"() : () -> ()
    %76 = arith.addf %61, %75 : vector<2x8x128xf32>
    %77 = tpu.concatenate %28, %44, %60, %76 in 2 : vector<2x8x128xf32>, vector<2x8x128xf32>, vector<2x8x128xf32>, vector<2x8x128xf32> -> vector<2x8x512xf32>
    %78 = vector.shape_cast %77 : vector<2x8x512xf32> to vector<16x512xf32>
    %c0_22 = arith.constant 0 : index
    %c0_23 = arith.constant 0 : index
    %79 = vector.load %arg4[%c0_22, %c0_23] : memref<512x128xf32, #tpu.memory_space<vmem>>, vector<512x128xf32>
    %cst_24 = arith.constant dense<0.000000e+00> : vector<16x128xf32>
    %80 = tpu.matmul %78, %79, %cst_24 {dimension_numbers = #tpu.dot_dimension_numbers<[1], [0], [0], [1], [0, 0, 1, 1], [], []>} : vector<16x512xf32>, vector<512x128xf32>, vector<16x128xf32> -> vector<16x128xf32>
    %c0_25 = arith.constant 0 : index
    %c0_26 = arith.constant 0 : index
    %81 = vector.load %arg5[%c0_25, %c0_26] : memref<512x128xf32, #tpu.memory_space<vmem>>, vector<512x128xf32>
    %cst_27 = arith.constant dense<0.000000e+00> : vector<16x128xf32>
    %82 = tpu.matmul %78, %81, %cst_27 {dimension_numbers = #tpu.dot_dimension_numbers<[1], [0], [0], [1], [0, 0, 1, 1], [], []>} : vector<16x512xf32>, vector<512x128xf32>, vector<16x128xf32> -> vector<16x128xf32>
    %c0_28 = arith.constant 0 : index
    %c0_29 = arith.constant 0 : index
    %83 = vector.load %arg6[%c0_28, %c0_29] : memref<1x128xf32, #tpu.memory_space<vmem>>, vector<1x128xf32>
    %84 = vector.broadcast %83 : vector<1x128xf32> to vector<16x128xf32>
    %85 = arith.addf %82, %84 : vector<16x128xf32>
    %cst_30 = arith.constant 0.000000e+00 : f32
    %86 = vector.broadcast %cst_30 : f32 to vector<16x128xf32>
    %87 = arith.maximumf %85, %86 : vector<16x128xf32>
    %88 = arith.addf %80, %87 : vector<16x128xf32>
    %89 = vector.shape_cast %88 : vector<16x128xf32> to vector<2x8x128xf32>
    %c0_31 = arith.constant 0 : index
    %c0_32 = arith.constant 0 : index
    %c0_33 = arith.constant 0 : index
    %90 = vector.load %arg7[%c0_31, %c0_32, %c0_33] : memref<2x8x128xf32, #tpu.memory_space<vmem>>, vector<2x8x128xf32>
    tpu.vector_store %arg7[%c0_31, %c0_32, %c0_33], %89 {strides = array<i32>} : memref<2x8x128xf32, #tpu.memory_space<vmem>>, vector<2x8x128xf32>,
    return
  }
  func.func @transform_0(%arg0: i32) -> (i32, i32, i32) {
    %c0_i32 = arith.constant 0 : i32
    %c0_i32_0 = arith.constant 0 : i32
    %c0_i32_1 = arith.constant 0 : i32
    return %arg0, %c0_i32, %c0_i32_0 : i32, i32, i32
  }
  func.func @transform_1(%arg0: i32) -> (i32, i32) {
    %c0_i32 = arith.constant 0 : i32
    %c0_i32_0 = arith.constant 0 : i32
    %c0_i32_1 = arith.constant 0 : i32
    return %c0_i32, %c0_i32_0 : i32, i32
  }
  func.func @transform_2(%arg0: i32) -> (i32, i32) {
    %c0_i32 = arith.constant 0 : i32
    %c0_i32_0 = arith.constant 0 : i32
    %c0_i32_1 = arith.constant 0 : i32
    return %c0_i32, %c0_i32_0 : i32, i32
  }
  func.func @transform_3(%arg0: i32) -> (i32, i32) {
    %c0_i32 = arith.constant 0 : i32
    %c0_i32_0 = arith.constant 0 : i32
    %c0_i32_1 = arith.constant 0 : i32
    return %c0_i32, %c0_i32_0 : i32, i32
  }
  func.func @transform_4(%arg0: i32) -> (i32, i32) {
    %c0_i32 = arith.constant 0 : i32
    %c0_i32_0 = arith.constant 0 : i32
    %c0_i32_1 = arith.constant 0 : i32
    return %c0_i32, %c0_i32_0 : i32, i32
  }
  func.func @transform_5(%arg0: i32) -> (i32, i32) {
    %c0_i32 = arith.constant 0 : i32
    %c0_i32_0 = arith.constant 0 : i32
    %c0_i32_1 = arith.constant 0 : i32
    return %c0_i32, %c0_i32_0 : i32, i32
  }
  func.func @transform_6(%arg0: i32) -> (i32, i32, i32) {
    %c0_i32 = arith.constant 0 : i32
    %c0_i32_0 = arith.constant 0 : i32
    %c0_i32_1 = arith.constant 0 : i32
    return %arg0, %c0_i32, %c0_i32_0 : i32, i32, i32
  }
}

</mosaic_0001>

<llo_original>
// kernel: tpu_custom_call.1
$region0: #{tpu_custom_call.1}
  #allocation0 [shape = 'u32[]', space=smem, size = 0x4, offset = 0x4, fixed_abs, tag = 'smem constant byte address 0x4 - core index']
  #allocation1 [shape = 'u32[144,128]{1,0:T(1,128)}', space=vmem, size = 0x12000, scoped, tag = 'internal scratch']
  %s0 = inlined_call_operand.hbm [shape: f32[2,8,32], index: 0, kind: input, shape index: {}]
  %s1 = inlined_call_operand.hbm [shape: f32[32,1536], index: 1, kind: input, shape index: {}]
  %s2 = inlined_call_operand.hbm [shape: f32[1,1536], index: 2, kind: input, shape index: {}]
  %s3 = inlined_call_operand.hbm [shape: f32[512,128], index: 3, kind: input, shape index: {}]
  %s4 = inlined_call_operand.hbm [shape: f32[512,128], index: 4, kind: input, shape index: {}]
  %s5 = inlined_call_operand.vmem [shape: f32[1,128], index: 5, kind: input, shape index: {}]
  %s6 = inlined_call_operand.hbm [shape: f32[2,8,128], index: 6, kind: output, shape index: {}]
  %s7 = sld [smem:[#allocation0]]
  $region54: #{tpu_custom_call.1} parent=0
    _
  %s9 = ssub.s32 1, %s7
  %s10 = scalar_select 0, %s9, %s7
  $region1: #{tpu_custom_call.1} parent=0
    #allocation2 [shape = 'u8[8192]{0}', space=vmem, size = 0x2000, scoped, tag = 'input window, operand 0, single buffered']
    #allocation3 [shape = 's32[1]{0}', space=sflag, size = 0x4, scoped, tag = 'scoped memory for tpu_custom_call.1']
    #allocation4 [shape = 's32[1]{0}', space=sflag, size = 0x4, scoped, tag = 'scoped memory for tpu_custom_call.1']
    #allocation5 [shape = 'u8[196608]{0}', space=vmem, size = 0x30000, scoped, tag = 'input window, operand 1, single buffered']
    #allocation6 [shape = 's32[1]{0}', space=sflag, size = 0x4, scoped, tag = 'scoped memory for tpu_custom_call.1']
    #allocation7 [shape = 'u8[6144]{0}', space=vmem, size = 0x1800, scoped, tag = 'input window, operand 2, single buffered']
    #allocation8 [shape = 'u8[262144]{0}', space=vmem, size = 0x40000, scoped, tag = 'input window, operand 3, single buffered']
    #allocation9 [shape = 's32[1]{0}', space=sflag, size = 0x4, scoped, tag = 'scoped memory for tpu_custom_call.1']
    #allocation10 [shape = 'u8[262144]{0}', space=vmem, size = 0x40000, scoped, tag = 'input window, operand 4, single buffered']
    #allocation11 [shape = 'u8[8192]{0}', space=vmem, size = 0x2000, scoped, tag = 'output window, operand 0, single buffered']
    %11 = vsyncpa [#allocation3], 0
    %12 = vsyncpa [#allocation6], 0
    %13 = vsyncpa [#allocation9], 0
    %14 = vsyncpa [#allocation4], 0
    // Predicated region
    $region2: #{tpu_custom_call.1} parent=1 // pred_check
      _
    $region3: #{tpu_custom_call.1} parent=1 // pred_check_branch
      %16 = sbr.rel (0) target = $region5
    $region4: #{tpu_custom_call.1} parent=1 // pred_region
      %s18 = ssub.s32 256, 256
      %19 = vsyncadd [#allocation3], %s18
      %s20 = sshll.u32 [#allocation2], 4
      %s21 = int_to_ptr.vmem [resolvable:$true] %s20
      %26 = dma.hbm_to_vmem [thread:$0]  %s0, 256, %s21, [#allocation3], 128, 128, 8
    $region5: #{tpu_custom_call.1} parent=1 // pred_fallthru
      _
    // Predicated region
    $region6: #{tpu_custom_call.1} parent=1 // pred_check
      _
    $region7: #{tpu_custom_call.1} parent=1 // pred_check_branch
      %28 = sbr.rel (0) target = $region9
    $region8: #{tpu_custom_call.1} parent=1 // pred_region
      %s30 = ssub.s32 6144, 6144
      %31 = vsyncadd [#allocation6], %s30
      %s32 = sshll.u32 [#allocation5], 4
      %s33 = int_to_ptr.vmem [resolvable:$true] %s32
      %38 = dma.hbm_to_vmem [thread:$0]  %s1, 6144, %s33, [#allocation6], 1536, 1536, 96
    $region9: #{tpu_custom_call.1} parent=1 // pred_fallthru
      _
    // Predicated region
    $region10: #{tpu_custom_call.1} parent=1 // pred_check
      _
    $region11: #{tpu_custom_call.1} parent=1 // pred_check_branch
      %40 = sbr.rel (0) target = $region13
    $region12: #{tpu_custom_call.1} parent=1 // pred_region
      %s42 = ssub.s32 192, 192
      %43 = vsyncadd [#allocation6], %s42
      %s45 = sshll.u32 [#allocation7], 4
      %s46 = int_to_ptr.vmem [resolvable:$true] %s45
      %48 = dma.hbm_to_vmem [thread:$0]  %s2, 192, %s46, [#allocation6]
    $region13: #{tpu_custom_call.1} parent=1 // pred_fallthru
      _
    // Predicated region
    $region14: #{tpu_custom_call.1} parent=1 // pred_check
      _
    $region15: #{tpu_custom_call.1} parent=1 // pred_check_branch
      %50 = sbr.rel (0) target = $region17
    $region16: #{tpu_custom_call.1} parent=1 // pred_region
      %s52 = ssub.s32 8192, 8192
      %53 = vsyncadd [#allocation9], %s52
      %s54 = sshll.u32 [#allocation8], 4
      %s55 = int_to_ptr.vmem [resolvable:$true] %s54
      %60 = dma.hbm_to_vmem [thread:$0]  %s3, 8192, %s55, [#allocation9], 128, 128, 8
    $region17: #{tpu_custom_call.1} parent=1 // pred_fallthru
      _
    // Predicated region
    $region18: #{tpu_custom_call.1} parent=1 // pred_check
      _
    $region19: #{tpu_custom_call.1} parent=1 // pred_check_branch
      %62 = sbr.rel (0) target = $region21
    $region20: #{tpu_custom_call.1} parent=1 // pred_region
      %s64 = ssub.s32 8192, 8192
      %65 = vsyncadd [#allocation9], %s64
      %s66 = sshll.u32 [#allocation10], 4
      %s67 = int_to_ptr.vmem [resolvable:$true] %s66
      %72 = dma.hbm_to_vmem [thread:$0]  %s4, 8192, %s67, [#allocation9], 128, 128, 8
    $region21: #{tpu_custom_call.1} parent=1 // pred_fallthru
      _
    // Predicated region
    $region22: #{tpu_custom_call.1} parent=1 // pred_check
      _
    $region23: #{tpu_custom_call.1} parent=1 // pred_check_branch
      %74 = sbr.rel (0) target = $region25
    $region24: #{tpu_custom_call.1} parent=1 // pred_region
      _
    $region25: #{tpu_custom_call.1} parent=1 // pred_fallthru
      _
    // Predicated region
    $region26: #{tpu_custom_call.1} parent=1 // pred_check
      _
    $region27: #{tpu_custom_call.1} parent=1 // pred_check_branch
      %76 = sbr.rel (0) target = $region29
    $region28: #{tpu_custom_call.1} parent=1 // pred_region
      %77 = dma.done [#allocation3], 256
    $region29: #{tpu_custom_call.1} parent=1 // pred_fallthru
      _
    // Predicated region
    $region30: #{tpu_custom_call.1} parent=1 // pred_check
      _
    $region31: #{tpu_custom_call.1} parent=1 // pred_check_branch
      %79 = sbr.rel (0) target = $region33
    $region32: #{tpu_custom_call.1} parent=1 // pred_region
      %80 = dma.done [#allocation6], 6144
    $region33: #{tpu_custom_call.1} parent=1 // pred_fallthru
      _
    // Predicated region
    $region34: #{tpu_custom_call.1} parent=1 // pred_check
      _
    $region35: #{tpu_custom_call.1} parent=1 // pred_check_branch
      %82 = sbr.rel (0) target = $region37
    $region36: #{tpu_custom_call.1} parent=1 // pred_region
      %83 = dma.done [#allocation6], 192
    $region37: #{tpu_custom_call.1} parent=1 // pred_fallthru
      _
    // Predicated region
    $region38: #{tpu_custom_call.1} parent=1 // pred_check
      _
    $region39: #{tpu_custom_call.1} parent=1 // pred_check_branch
      %85 = sbr.rel (0) target = $region41
    $region40: #{tpu_custom_call.1} parent=1 // pred_region
      %86 = dma.done [#allocation9], 8192
    $region41: #{tpu_custom_call.1} parent=1 // pred_fallthru
      _
    // Predicated region
    $region42: #{tpu_custom_call.1} parent=1 // pred_check
      _
    $region43: #{tpu_custom_call.1} parent=1 // pred_check_branch
      %88 = sbr.rel (0) target = $region45
    $region44: #{tpu_custom_call.1} parent=1 // pred_region
      %89 = dma.done [#allocation9], 8192
    $region45: #{tpu_custom_call.1} parent=1 // pred_fallthru
      _
    %v90 = vld [vmem:[#allocation2] sm:$0xff]
    %v91 = vld [vmem:[#allocation2 + $0x8] sm:$0xff]
    %v92 = vld [vmem:[#allocation5] sm:$0xff]
    %v93 = vld [vmem:[#allocation5 + $0x8] sm:$0xff]
    %v94 = vld [vmem:[#allocation5 + $0x10] sm:$0xff]
    %v95 = vld [vmem:[#allocation5 + $0x18] sm:$0xff]
    %v96 = vld [vmem:[#allocation5 + $0x20] sm:$0xff]
    %v97 = vld [vmem:[#allocation5 + $0x28] sm:$0xff]
    %v98 = vld [vmem:[#allocation5 + $0x30] sm:$0xff]
    %v99 = vld [vmem:[#allocation5 + $0x38] sm:$0xff]
    %v100 = vld [vmem:[#allocation5 + $0x40] sm:$0xff]
    %v101 = vld [vmem:[#allocation5 + $0x48] sm:$0xff]
    %v102 = vld [vmem:[#allocation5 + $0x50] sm:$0xff]
    %v103 = vld [vmem:[#allocation5 + $0x58] sm:$0xff]
    %v104 = vld [vmem:[#allocation5 + $0x60] sm:$0xff]
    %v105 = vld [vmem:[#allocation5 + $0x68] sm:$0xff]
    %v106 = vld [vmem:[#allocation5 + $0x70] sm:$0xff]
    %v107 = vld [vmem:[#allocation5 + $0x78] sm:$0xff]
    %v108 = vld [vmem:[#allocation5 + $0x80] sm:$0xff]
    %v109 = vld [vmem:[#allocation5 + $0x88] sm:$0xff]
    %v110 = vld [vmem:[#allocation5 + $0x90] sm:$0xff]
    %v111 = vld [vmem:[#allocation5 + $0x98] sm:$0xff]
    %v112 = vld [vmem:[#allocation5 + $0xa0] sm:$0xff]
    %v113 = vld [vmem:[#allocation5 + $0xa8] sm:$0xff]
    %v114 = vld [vmem:[#allocation5 + $0xb0] sm:$0xff]
    %v115 = vld [vmem:[#allocation5 + $0xb8] sm:$0xff]
    %v116 = vld [vmem:[#allocation5 + $0xc0] sm:$0xff]
    %v117 = vld [vmem:[#allocation5 + $0xc8] sm:$0xff]
    %v118 = vld [vmem:[#allocation5 + $0xd0] sm:$0xff]
    %v119 = vld [vmem:[#allocation5 + $0xd8] sm:$0xff]
    %v120 = vld [vmem:[#allocation5 + $0xe0] sm:$0xff]
    %v121 = vld [vmem:[#allocation5 + $0xe8] sm:$0xff]
    %v122 = vld [vmem:[#allocation5 + $0xf0] sm:$0xff]
    %v123 = vld [vmem:[#allocation5 + $0xf8] sm:$0xff]
    %v124 = vld [vmem:[#allocation5 + $0x100] sm:$0xff]
    %v125 = vld [vmem:[#allocation5 + $0x108] sm:$0xff]
    %v126 = vld [vmem:[#allocation5 + $0x110] sm:$0xff]
    %v127 = vld [vmem:[#allocation5 + $0x118] sm:$0xff]
    %v128 = vld [vmem:[#allocation5 + $0x120] sm:$0xff]
    %v129 = vld [vmem:[#allocation5 + $0x128] sm:$0xff]
    %v130 = vld [vmem:[#allocation5 + $0x130] sm:$0xff]
    %v131 = vld [vmem:[#allocation5 + $0x138] sm:$0xff]
    %v132 = vld [vmem:[#allocation5 + $0x140] sm:$0xff]
    %v133 = vld [vmem:[#allocation5 + $0x148] sm:$0xff]
    %v134 = vld [vmem:[#allocation5 + $0x150] sm:$0xff]
    %v135 = vld [vmem:[#allocation5 + $0x158] sm:$0xff]
    %v136 = vld [vmem:[#allocation5 + $0x160] sm:$0xff]
    %v137 = vld [vmem:[#allocation5 + $0x168] sm:$0xff]
    %v138 = vld [vmem:[#allocation5 + $0x170] sm:$0xff]
    %v139 = vld [vmem:[#allocation5 + $0x178] sm:$0xff]
    %v140 = vld [vmem:[#allocation7] sm:$0xff]
    %v141 = vld [vmem:[#allocation7 + $0x8] sm:$0xf]
    %v144 = vlaneseq
    %v145 = vshrl.u32 %v144, 7
    %v146 = vsub.s32 0, %v145
    %v147 = vrot.slane %v140, %v146
    %v148 = vlaneseq
    %v149 = vshrl.u32 %v148, 7
    %v150 = vsub.s32 1, %v149
    %v151 = vrot.slane %v140, %v150
    %v152 = vlaneseq
    %v153 = vshrl.u32 %v152, 7
    %v154 = vsub.s32 2, %v153
    %v155 = vrot.slane %v140, %v154
    %v156 = vlaneseq
    %v157 = vshrl.u32 %v156, 7
    %v158 = vsub.s32 3, %v157
    %v159 = vrot.slane %v140, %v158
    %v160 = vlaneseq
    %v161 = vshrl.u32 %v160, 7
    %v162 = vsub.s32 4, %v161
    %v163 = vrot.slane %v140, %v162
    %v164 = vlaneseq
    %v165 = vshrl.u32 %v164, 7
    %v166 = vsub.s32 5, %v165
    %v167 = vrot.slane %v140, %v166
    %v168 = vlaneseq
    %v169 = vshrl.u32 %v168, 7
    %v170 = vsub.s32 6, %v169
    %v171 = vrot.slane %v140, %v170
    %v172 = vlaneseq
    %v173 = vshrl.u32 %v172, 7
    %v174 = vsub.s32 7, %v173
    %v175 = vrot.slane %v140, %v174
    %v176 = vlaneseq
    %v177 = vshrl.u32 %v176, 7
    %v178 = vsub.s32 0, %v177
    %v179 = vrot.slane %v141, %v178
    %v180 = vlaneseq
    %v181 = vshrl.u32 %v180, 7
    %v182 = vsub.s32 1, %v181
    %v183 = vrot.slane %v141, %v182
    %v184 = vlaneseq
    %v185 = vshrl.u32 %v184, 7
    %v186 = vsub.s32 2, %v185
    %v187 = vrot.slane %v141, %v186
    %v188 = vlaneseq
    %v189 = vshrl.u32 %v188, 7
    %v190 = vsub.s32 3, %v189
    %v191 = vrot.slane %v141, %v190
    %vm204 = vcmask 261120
    %v206 = vsel %vm204, %v90, 0
    %v209 = vsel %vm204, %v91, 0
    %211 = vmatprep.subr.mxu0 0.0
    %212 = vmatpush1.msra.mxu0 0.0
    %213 = vmatprep.subr.mxu0 0.0
    %214 = vmatpush1.msra.mxu0 0.0
    %215 = vmatprep.subr.mxu0 0.0
    %216 = vmatpush1.msra.mxu0 0.0
    %217 = vmatprep.subr.mxu0 0.0
    %218 = vmatpush1.msra.mxu0 0.0
    %219 = vmatprep.subr.mxu0 0.0
    %220 = vmatpush1.msra.mxu0 0.0
    %221 = vmatprep.subr.mxu0 0.0
    %222 = vmatpush1.msra.mxu0 0.0
    %223 = vmatprep.subr.mxu0 0.0
    %224 = vmatpush1.msra.mxu0 0.0
    %225 = vmatprep.subr.mxu0 0.0
    %226 = vmatpush1.msra.mxu0 0.0
    %227 = vmatprep.subr.mxu0 0.0
    %228 = vmatpush1.msra.mxu0 0.0
    %229 = vmatprep.subr.mxu0 0.0
    %230 = vmatpush1.msra.mxu0 0.0
    %231 = vmatprep.subr.mxu0 0.0
    %232 = vmatpush1.msra.mxu0 0.0
    %233 = vmatprep.subr.mxu0 0.0
    %234 = vmatpush1.msra.mxu0 0.0
    %235 = vmatprep.subr.mxu0 %v129
    %236 = vmatpush1.msra.mxu0 %v128
    %237 = vmatprep.subr.mxu0 %v117
    %238 = vmatpush1.msra.mxu0 %v116
    %239 = vmatprep.subr.mxu0 %v105
    %240 = vmatpush1.msra.mxu0 %v104
    %241 = vmatprep.subr.mxu0 %v93
    %242 = vmatpush1.msra.mxu0 %v92
    %243 = vmatprep.subr.mxu0 0.0
    %244 = vmatpush2.msra.mxu0 0.0
    %245 = vmatprep.subr.mxu0 0.0
    %246 = vmatpush2.msra.mxu0 0.0
    %247 = vmatprep.subr.mxu0 0.0
    %248 = vmatpush2.msra.mxu0 0.0
    %249 = vmatprep.subr.mxu0 0.0
    %250 = vmatpush2.msra.mxu0 0.0
    %251 = vmatprep.subr.mxu0 0.0
    %252 = vmatpush2.msra.mxu0 0.0
    %253 = vmatprep.subr.mxu0 0.0
    %254 = vmatpush2.msra.mxu0 0.0
    %255 = vmatprep.subr.mxu0 0.0
    %256 = vmatpush2.msra.mxu0 0.0
    %257 = vmatprep.subr.mxu0 0.0
    %258 = vmatpush2.msra.mxu0 0.0
    %259 = vmatprep.subr.mxu0 0.0
    %260 = vmatpush2.msra.mxu0 0.0
    %261 = vmatprep.subr.mxu0 0.0
    %262 = vmatpush2.msra.mxu0 0.0
    %263 = vmatprep.subr.mxu0 0.0
    %264 = vmatpush2.msra.mxu0 0.0
    %265 = vmatprep.subr.mxu0 0.0
    %266 = vmatpush2.msra.mxu0 0.0
    %267 = vmatprep.subr.mxu0 0.0
    %268 = vmatpush2.msra.mxu0 0.0
    %269 = vmatprep.subr.mxu0 0.0
    %270 = vmatpush2.msra.mxu0 0.0
    %271 = vmatprep.subr.mxu0 0.0
    %272 = vmatpush2.msra.mxu0 0.0
    %273 = vmatprep.subr.mxu0 0.0
    %274 = vmatpush2.msra.mxu0 0.0
    %275 = vmatprep.mubr.f32.mxu0 0.0
    %276 = vmatmul.mubr.f32.gmra.mxu0 %v206
    %v277 = vpop.f32.mrf.mxu0
    %v278 = vadd.f32 %v147, %v277
    %v279 = vpop.f32.mrf.mxu0
    %v280 = vadd.f32 %v151, %v279
    %281 = vmatprep.mubr.f32.mxu0 0.0
    %282 = vmatmul.mubr.f32.gmra.mxu0 %v209
    %v283 = vpop.f32.mrf.mxu0
    %v284 = vadd.f32 %v147, %v283
    %v285 = vpop.f32.mrf.mxu0
    %v286 = vadd.f32 %v151, %v285
    %287 = vdwg.mxu0
    %288 = vmatprep.subr.mxu0 0.0
    %289 = vmatpush1.msra.mxu0 0.0
    %290 = vmatprep.subr.mxu0 0.0
    %291 = vmatpush1.msra.mxu0 0.0
    %292 = vmatprep.subr.mxu0 0.0
    %293 = vmatpush1.msra.mxu0 0.0
    %294 = vmatprep.subr.mxu0 0.0
    %295 = vmatpush1.msra.mxu0 0.0
    %296 = vmatprep.subr.mxu0 0.0
    %297 = vmatpush1.msra.mxu0 0.0
    %298 = vmatprep.subr.mxu0 0.0
    %299 = vmatpush1.msra.mxu0 0.0
    %300 = vmatprep.subr.mxu0 0.0
    %301 = vmatpush1.msra.mxu0 0.0
    %302 = vmatprep.subr.mxu0 0.0
    %303 = vmatpush1.msra.mxu0 0.0
    %304 = vmatprep.subr.mxu0 0.0
    %305 = vmatpush1.msra.mxu0 0.0
    %306 = vmatprep.subr.mxu0 0.0
    %307 = vmatpush1.msra.mxu0 0.0
    %308 = vmatprep.subr.mxu0 0.0
    %309 = vmatpush1.msra.mxu0 0.0
    %310 = vmatprep.subr.mxu0 0.0
    %311 = vmatpush1.msra.mxu0 0.0
    %312 = vmatprep.subr.mxu0 %v131
    %313 = vmatpush1.msra.mxu0 %v130
    %314 = vmatprep.subr.mxu0 %v119
    %315 = vmatpush1.msra.mxu0 %v118
    %316 = vmatprep.subr.mxu0 %v107
    %317 = vmatpush1.msra.mxu0 %v106
    %318 = vmatprep.subr.mxu0 %v95
    %319 = vmatpush1.msra.mxu0 %v94
    %320 = vmatprep.subr.mxu0 0.0
    %321 = vmatpush2.msra.mxu0 0.0
    %322 = vmatprep.subr.mxu0 0.0
    %323 = vmatpush2.msra.mxu0 0.0
    %324 = vmatprep.subr.mxu0 0.0
    %325 = vmatpush2.msra.mxu0 0.0
    %326 = vmatprep.subr.mxu0 0.0
    %327 = vmatpush2.msra.mxu0 0.0
    %328 = vmatprep.subr.mxu0 0.0
    %329 = vmatpush2.msra.mxu0 0.0
    %330 = vmatprep.subr.mxu0 0.0
    %331 = vmatpush2.msra.mxu0 0.0
    %332 = vmatprep.subr.mxu0 0.0
    %333 = vmatpush2.msra.mxu0 0.0
    %334 = vmatprep.subr.mxu0 0.0
    %335 = vmatpush2.msra.mxu0 0.0
    %336 = vmatprep.subr.mxu0 0.0
    %337 = vmatpush2.msra.mxu0 0.0
    %338 = vmatprep.subr.mxu0 0.0
    %339 = vmatpush2.msra.mxu0 0.0
    %340 = vmatprep.subr.mxu0 0.0
    %341 = vmatpush2.msra.mxu0 0.0
    %342 = vmatprep.subr.mxu0 0.0
    %343 = vmatpush2.msra.mxu0 0.0
    %344 = vmatprep.subr.mxu0 0.0
    %345 = vmatpush2.msra.mxu0 0.0
    %346 = vmatprep.subr.mxu0 0.0
    %347 = vmatpush2.msra.mxu0 0.0
    %348 = vmatprep.subr.mxu0 0.0
    %349 = vmatpush2.msra.mxu0 0.0
    %350 = vmatprep.subr.mxu0 0.0
    %351 = vmatpush2.msra.mxu0 0.0
    %352 = vmatprep.mubr.f32.mxu0 0.0
    %353 = vmatmul.mubr.f32.gmra.mxu0 %v206
    %v354 = vpop.f32.mrf.mxu0
    %v355 = vadd.f32 %v155, %v354
    %v356 = vpop.f32.mrf.mxu0
    %v357 = vadd.f32 %v159, %v356
    %358 = vmatprep.mubr.f32.mxu0 0.0
    %359 = vmatmul.mubr.f32.gmra.mxu0 %v209
    %v360 = vpop.f32.mrf.mxu0
    %v361 = vadd.f32 %v155, %v360
    %v362 = vpop.f32.mrf.mxu0
    %v363 = vadd.f32 %v159, %v362
    %364 = vdwg.mxu0
    %365 = vmatprep.subr.mxu0 0.0
    %366 = vmatpush1.msra.mxu0 0.0
    %367 = vmatprep.subr.mxu0 0.0
    %368 = vmatpush1.msra.mxu0 0.0
    %369 = vmatprep.subr.mxu0 0.0
    %370 = vmatpush1.msra.mxu0 0.0
    %371 = vmatprep.subr.mxu0 0.0
    %372 = vmatpush1.msra.mxu0 0.0
    %373 = vmatprep.subr.mxu0 0.0
    %374 = vmatpush1.msra.mxu0 0.0
    %375 = vmatprep.subr.mxu0 0.0
    %376 = vmatpush1.msra.mxu0 0.0
    %377 = vmatprep.subr.mxu0 0.0
    %378 = vmatpush1.msra.mxu0 0.0
    %379 = vmatprep.subr.mxu0 0.0
    %380 = vmatpush1.msra.mxu0 0.0
    %381 = vmatprep.subr.mxu0 0.0
    %382 = vmatpush1.msra.mxu0 0.0
    %383 = vmatprep.subr.mxu0 0.0
    %384 = vmatpush1.msra.mxu0 0.0
    %385 = vmatprep.subr.mxu0 0.0
    %386 = vmatpush1.msra.mxu0 0.0
    %387 = vmatprep.subr.mxu0 0.0
    %388 = vmatpush1.msra.mxu0 0.0
    %389 = vmatprep.subr.mxu0 %v133
    %390 = vmatpush1.msra.mxu0 %v132
    %391 = vmatprep.subr.mxu0 %v121
    %392 = vmatpush1.msra.mxu0 %v120
    %393 = vmatprep.subr.mxu0 %v109
    %394 = vmatpush1.msra.mxu0 %v108
    %395 = vmatprep.subr.mxu0 %v97
    %396 = vmatpush1.msra.mxu0 %v96
    %397 = vmatprep.subr.mxu0 0.0
    %398 = vmatpush2.msra.mxu0 0.0
    %399 = vmatprep.subr.mxu0 0.0
    %400 = vmatpush2.msra.mxu0 0.0
    %401 = vmatprep.subr.mxu0 0.0
    %402 = vmatpush2.msra.mxu0 0.0
    %403 = vmatprep.subr.mxu0 0.0
    %404 = vmatpush2.msra.mxu0 0.0
    %405 = vmatprep.subr.mxu0 0.0
    %406 = vmatpush2.msra.mxu0 0.0
    %407 = vmatprep.subr.mxu0 0.0
    %408 = vmatpush2.msra.mxu0 0.0
    %409 = vmatprep.subr.mxu0 0.0
    %410 = vmatpush2.msra.mxu0 0.0
    %411 = vmatprep.subr.mxu0 0.0
    %412 = vmatpush2.msra.mxu0 0.0
    %413 = vmatprep.subr.mxu0 0.0
    %414 = vmatpush2.msra.mxu0 0.0
    %415 = vmatprep.subr.mxu0 0.0
    %416 = vmatpush2.msra.mxu0 0.0
    %417 = vmatprep.subr.mxu0 0.0
    %418 = vmatpush2.msra.mxu0 0.0
    %419 = vmatprep.subr.mxu0 0.0
    %420 = vmatpush2.msra.mxu0 0.0
    %421 = vmatprep.subr.mxu0 0.0
    %422 = vmatpush2.msra.mxu0 0.0
    %423 = vmatprep.subr.mxu0 0.0
    %424 = vmatpush2.msra.mxu0 0.0
    %425 = vmatprep.subr.mxu0 0.0
    %426 = vmatpush2.msra.mxu0 0.0
    %427 = vmatprep.subr.mxu0 0.0
    %428 = vmatpush2.msra.mxu0 0.0
    %429 = vmatprep.mubr.f32.mxu0 0.0
    %430 = vmatmul.mubr.f32.gmra.mxu0 %v206
    %v431 = vpop.f32.mrf.mxu0
    %v432 = vadd.f32 %v163, %v431
    %v433 = vpop.f32.mrf.mxu0
    %v434 = vadd.f32 %v167, %v433
    %435 = vmatprep.mubr.f32.mxu0 0.0
    %436 = vmatmul.mubr.f32.gmra.mxu0 %v209
    %v437 = vpop.f32.mrf.mxu0
    %v438 = vadd.f32 %v163, %v437
    %v439 = vpop.f32.mrf.mxu0
    %v440 = vadd.f32 %v167, %v439
    %441 = vdwg.mxu0
    %442 = vmatprep.subr.mxu0 0.0
    %443 = vmatpush1.msra.mxu0 0.0
    %444 = vmatprep.subr.mxu0 0.0
    %445 = vmatpush1.msra.mxu0 0.0
    %446 = vmatprep.subr.mxu0 0.0
    %447 = vmatpush1.msra.mxu0 0.0
    %448 = vmatprep.subr.mxu0 0.0
    %449 = vmatpush1.msra.mxu0 0.0
    %450 = vmatprep.subr.mxu0 0.0
    %451 = vmatpush1.msra.mxu0 0.0
    %452 = vmatprep.subr.mxu0 0.0
    %453 = vmatpush1.msra.mxu0 0.0
    %454 = vmatprep.subr.mxu0 0.0
    %455 = vmatpush1.msra.mxu0 0.0
    %456 = vmatprep.subr.mxu0 0.0
    %457 = vmatpush1.msra.mxu0 0.0
    %458 = vmatprep.subr.mxu0 0.0
    %459 = vmatpush1.msra.mxu0 0.0
    %460 = vmatprep.subr.mxu0 0.0
    %461 = vmatpush1.msra.mxu0 0.0
    %462 = vmatprep.subr.mxu0 0.0
    %463 = vmatpush1.msra.mxu0 0.0
    %464 = vmatprep.subr.mxu0 0.0
    %465 = vmatpush1.msra.mxu0 0.0
    %466 = vmatprep.subr.mxu0 %v135
    %467 = vmatpush1.msra.mxu0 %v134
    %468 = vmatprep.subr.mxu0 %v123
    %469 = vmatpush1.msra.mxu0 %v122
    %470 = vmatprep.subr.mxu0 %v111
    %471 = vmatpush1.msra.mxu0 %v110
    %472 = vmatprep.subr.mxu0 %v99
    %473 = vmatpush1.msra.mxu0 %v98
    %474 = vmatprep.subr.mxu0 0.0
    %475 = vmatpush2.msra.mxu0 0.0
    %476 = vmatprep.subr.mxu0 0.0
    %477 = vmatpush2.msra.mxu0 0.0
    %478 = vmatprep.subr.mxu0 0.0
    %479 = vmatpush2.msra.mxu0 0.0
    %480 = vmatprep.subr.mxu0 0.0
    %481 = vmatpush2.msra.mxu0 0.0
    %482 = vmatprep.subr.mxu0 0.0
    %483 = vmatpush2.msra.mxu0 0.0
    %484 = vmatprep.subr.mxu0 0.0
    %485 = vmatpush2.msra.mxu0 0.0
    %486 = vmatprep.subr.mxu0 0.0
    %487 = vmatpush2.msra.mxu0 0.0
    %488 = vmatprep.subr.mxu0 0.0
    %489 = vmatpush2.msra.mxu0 0.0
    %490 = vmatprep.subr.mxu0 0.0
    %491 = vmatpush2.msra.mxu0 0.0
    %492 = vmatprep.subr.mxu0 0.0
    %493 = vmatpush2.msra.mxu0 0.0
    %494 = vmatprep.subr.mxu0 0.0
    %495 = vmatpush2.msra.mxu0 0.0
    %496 = vmatprep.subr.mxu0 0.0
    %497 = vmatpush2.msra.mxu0 0.0
    %498 = vmatprep.subr.mxu0 0.0
    %499 = vmatpush2.msra.mxu0 0.0
    %500 = vmatprep.subr.mxu0 0.0
    %501 = vmatpush2.msra.mxu0 0.0
    %502 = vmatprep.subr.mxu0 0.0
    %503 = vmatpush2.msra.mxu0 0.0
    %504 = vmatprep.subr.mxu0 0.0
    %505 = vmatpush2.msra.mxu0 0.0
    %506 = vmatprep.mubr.f32.mxu0 0.0
    %507 = vmatmul.mubr.f32.gmra.mxu0 %v206
    %v508 = vpop.f32.mrf.mxu0
    %v509 = vadd.f32 %v171, %v508
    %v510 = vpop.f32.mrf.mxu0
    %v511 = vadd.f32 %v175, %v510
    %512 = vmatprep.mubr.f32.mxu0 0.0
    %513 = vmatmul.mubr.f32.gmra.mxu0 %v209
    %v514 = vpop.f32.mrf.mxu0
    %v515 = vadd.f32 %v171, %v514
    %v516 = vpop.f32.mrf.mxu0
    %v517 = vadd.f32 %v175, %v516
    %518 = vdwg.mxu0
    %519 = vmatprep.subr.mxu0 0.0
    %520 = vmatpush1.msra.mxu0 0.0
    %521 = vmatprep.subr.mxu0 0.0
    %522 = vmatpush1.msra.mxu0 0.0
    %523 = vmatprep.subr.mxu0 0.0
    %524 = vmatpush1.msra.mxu0 0.0
    %525 = vmatprep.subr.mxu0 0.0
    %526 = vmatpush1.msra.mxu0 0.0
    %527 = vmatprep.subr.mxu0 0.0
    %528 = vmatpush1.msra.mxu0 0.0
    %529 = vmatprep.subr.mxu0 0.0
    %530 = vmatpush1.msra.mxu0 0.0
    %531 = vmatprep.subr.mxu0 0.0
    %532 = vmatpush1.msra.mxu0 0.0
    %533 = vmatprep.subr.mxu0 0.0
    %534 = vmatpush1.msra.mxu0 0.0
    %535 = vmatprep.subr.mxu0 0.0
    %536 = vmatpush1.msra.mxu0 0.0
    %537 = vmatprep.subr.mxu0 0.0
    %538 = vmatpush1.msra.mxu0 0.0
    %539 = vmatprep.subr.mxu0 0.0
    %540 = vmatpush1.msra.mxu0 0.0
    %541 = vmatprep.subr.mxu0 0.0
    %542 = vmatpush1.msra.mxu0 0.0
    %543 = vmatprep.subr.mxu0 %v137
    %544 = vmatpush1.msra.mxu0 %v136
    %545 = vmatprep.subr.mxu0 %v125
    %546 = vmatpush1.msra.mxu0 %v124
    %547 = vmatprep.subr.mxu0 %v113
    %548 = vmatpush1.msra.mxu0 %v112
    %549 = vmatprep.subr.mxu0 %v101
    %550 = vmatpush1.msra.mxu0 %v100
    %551 = vmatprep.subr.mxu0 0.0
    %552 = vmatpush2.msra.mxu0 0.0
    %553 = vmatprep.subr.mxu0 0.0
    %554 = vmatpush2.msra.mxu0 0.0
    %555 = vmatprep.subr.mxu0 0.0
    %556 = vmatpush2.msra.mxu0 0.0
    %557 = vmatprep.subr.mxu0 0.0
    %558 = vmatpush2.msra.mxu0 0.0
    %559 = vmatprep.subr.mxu0 0.0
    %560 = vmatpush2.msra.mxu0 0.0
    %561 = vmatprep.subr.mxu0 0.0
    %562 = vmatpush2.msra.mxu0 0.0
    %563 = vmatprep.subr.mxu0 0.0
    %564 = vmatpush2.msra.mxu0 0.0
    %565 = vmatprep.subr.mxu0 0.0
    %566 = vmatpush2.msra.mxu0 0.0
    %567 = vmatprep.subr.mxu0 0.0
    %568 = vmatpush2.msra.mxu0 0.0
    %569 = vmatprep.subr.mxu0 0.0
    %570 = vmatpush2.msra.mxu0 0.0
    %571 = vmatprep.subr.mxu0 0.0
    %572 = vmatpush2.msra.mxu0 0.0
    %573 = vmatprep.subr.mxu0 0.0
    %574 = vmatpush2.msra.mxu0 0.0
    %575 = vmatprep.subr.mxu0 0.0
    %576 = vmatpush2.msra.mxu0 0.0
    %577 = vmatprep.subr.mxu0 0.0
    %578 = vmatpush2.msra.mxu0 0.0
    %579 = vmatprep.subr.mxu0 0.0
    %580 = vmatpush2.msra.mxu0 0.0
    %581 = vmatprep.subr.mxu0 0.0
    %582 = vmatpush2.msra.mxu0 0.0
    %583 = vmatprep.mubr.f32.mxu0 0.0
    %584 = vmatmul.mubr.f32.gmra.mxu0 %v206
    %v585 = vpop.f32.mrf.mxu0
    %v586 = vadd.f32 %v179, %v585
    %v587 = vpop.f32.mrf.mxu0
    %v588 = vadd.f32 %v183, %v587
    %589 = vmatprep.mubr.f32.mxu0 0.0
    %590 = vmatmul.mubr.f32.gmra.mxu0 %v209
    %v591 = vpop.f32.mrf.mxu0
    %v592 = vadd.f32 %v179, %v591
    %v593 = vpop.f32.mrf.mxu0
    %v594 = vadd.f32 %v183, %v593
    %595 = vdwg.mxu0
    %596 = vmatprep.subr.mxu0 0.0
    %597 = vmatpush1.msra.mxu0 0.0
    %598 = vmatprep.subr.mxu0 0.0
    %599 = vmatpush1.msra.mxu0 0.0
    %600 = vmatprep.subr.mxu0 0.0
    %601 = vmatpush1.msra.mxu0 0.0
    %602 = vmatprep.subr.mxu0 0.0
    %603 = vmatpush1.msra.mxu0 0.0
    %604 = vmatprep.subr.mxu0 0.0
    %605 = vmatpush1.msra.mxu0 0.0
    %606 = vmatprep.subr.mxu0 0.0
    %607 = vmatpush1.msra.mxu0 0.0
    %608 = vmatprep.subr.mxu0 0.0
    %609 = vmatpush1.msra.mxu0 0.0
    %610 = vmatprep.subr.mxu0 0.0
    %611 = vmatpush1.msra.mxu0 0.0
    %612 = vmatprep.subr.mxu0 0.0
    %613 = vmatpush1.msra.mxu0 0.0
    %614 = vmatprep.subr.mxu0 0.0
    %615 = vmatpush1.msra.mxu0 0.0
    %616 = vmatprep.subr.mxu0 0.0
    %617 = vmatpush1.msra.mxu0 0.0
    %618 = vmatprep.subr.mxu0 0.0
    %619 = vmatpush1.msra.mxu0 0.0
    %620 = vmatprep.subr.mxu0 %v139
    %621 = vmatpush1.msra.mxu0 %v138
    %622 = vmatprep.subr.mxu0 %v127
    %623 = vmatpush1.msra.mxu0 %v126
    %624 = vmatprep.subr.mxu0 %v115
    %625 = vmatpush1.msra.mxu0 %v114
    %626 = vmatprep.subr.mxu0 %v103
    %627 = vmatpush1.msra.mxu0 %v102
    %628 = vmatprep.subr.mxu0 0.0
    %629 = vmatpush2.msra.mxu0 0.0
    %630 = vmatprep.subr.mxu0 0.0
    %631 = vmatpush2.msra.mxu0 0.0
    %632 = vmatprep.subr.mxu0 0.0
    %633 = vmatpush2.msra.mxu0 0.0
    %634 = vmatprep.subr.mxu0 0.0
    %635 = vmatpush2.msra.mxu0 0.0
    %636 = vmatprep.subr.mxu0 0.0
    %637 = vmatpush2.msra.mxu0 0.0
    %638 = vmatprep.subr.mxu0 0.0
    %639 = vmatpush2.msra.mxu0 0.0
    %640 = vmatprep.subr.mxu0 0.0
    %641 = vmatpush2.msra.mxu0 0.0
    %642 = vmatprep.subr.mxu0 0.0
    %643 = vmatpush2.msra.mxu0 0.0
    %644 = vmatprep.subr.mxu0 0.0
    %645 = vmatpush2.msra.mxu0 0.0
    %646 = vmatprep.subr.mxu0 0.0
    %647 = vmatpush2.msra.mxu0 0.0
    %648 = vmatprep.subr.mxu0 0.0
    %649 = vmatpush2.msra.mxu0 0.0
    %650 = vmatprep.subr.mxu0 0.0
    %651 = vmatpush2.msra.mxu0 0.0
    %652 = vmatprep.subr.mxu0 0.0
    %653 = vmatpush2.msra.mxu0 0.0
    %654 = vmatprep.subr.mxu0 0.0
    %655 = vmatpush2.msra.mxu0 0.0
    %656 = vmatprep.subr.mxu0 0.0
    %657 = vmatpush2.msra.mxu0 0.0
    %658 = vmatprep.subr.mxu0 0.0
    %659 = vmatpush2.msra.mxu0 0.0
    %660 = vmatprep.mubr.f32.mxu0 0.0
    %661 = vmatmul.mubr.f32.gmra.mxu0 %v206
    %v662 = vpop.f32.mrf.mxu0
    %v663 = vadd.f32 %v187, %v662
    %v664 = vpop.f32.mrf.mxu0
    %v665 = vadd.f32 %v191, %v664
    %666 = vmatprep.mubr.f32.mxu0 0.0
    %667 = vmatmul.mubr.f32.gmra.mxu0 %v209
    %v668 = vpop.f32.mrf.mxu0
    %v669 = vadd.f32 %v187, %v668
    %v670 = vpop.f32.mrf.mxu0
    %v671 = vadd.f32 %v191, %v670
    %672 = vdwg.mxu0
    %673 = vmatprep.subr.mxu0 0.0
    %674 = vmatpush1.xpose.msra.mxu0 0.0
    %675 = vmatprep.subr.mxu0 0.0
    %676 = vmatpush1.xpose.msra.mxu0 0.0
    %677 = vmatprep.subr.mxu0 0.0
    %678 = vmatpush1.xpose.msra.mxu0 0.0
    %679 = vmatprep.subr.mxu0 0.0
    %680 = vmatpush1.xpose.msra.mxu0 0.0
    %681 = vmatprep.subr.mxu0 0.0
    %682 = vmatpush1.xpose.msra.mxu0 0.0
    %683 = vmatprep.subr.mxu0 0.0
    %684 = vmatpush1.xpose.msra.mxu0 0.0
    %685 = vmatprep.subr.mxu0 0.0
    %686 = vmatpush1.xpose.msra.mxu0 0.0
    %687 = vmatprep.subr.mxu0 0.0
    %688 = vmatpush1.xpose.msra.mxu0 0.0
    %689 = vmatprep.subr.mxu0 0.0
    %690 = vmatpush1.xpose.msra.mxu0 0.0
    %691 = vmatprep.subr.mxu0 0.0
    %692 = vmatpush1.xpose.msra.mxu0 0.0
    %693 = vmatprep.subr.mxu0 0.0
    %694 = vmatpush1.xpose.msra.mxu0 0.0
    %695 = vmatprep.subr.mxu0 0.0
    %696 = vmatpush1.xpose.msra.mxu0 0.0
    %697 = vmatprep.subr.mxu0 0.0
    %698 = vmatpush1.xpose.msra.mxu0 0.0
    %699 = vmatprep.subr.mxu0 0.0
    %700 = vmatpush1.xpose.msra.mxu0 0.0
    %701 = vmatprep.subr.mxu0 0.0
    %702 = vmatpush1.xpose.msra.mxu0 0.0
    %703 = vmatprep.subr.mxu0 0.0
    %704 = vmatpush1.xpose.msra.mxu0 %v432
    %705 = vmatprep.subr.mxu0 0.0
    %706 = vmatpush2.xpose.msra.mxu0 0.0
    %707 = vmatprep.subr.mxu0 0.0
    %708 = vmatpush2.xpose.msra.mxu0 0.0
    %709 = vmatprep.subr.mxu0 0.0
    %710 = vmatpush2.xpose.msra.mxu0 0.0
    %711 = vmatprep.subr.mxu0 0.0
    %712 = vmatpush2.xpose.msra.mxu0 0.0
    %713 = vmatprep.subr.mxu0 0.0
    %714 = vmatpush2.xpose.msra.mxu0 0.0
    %715 = vmatprep.subr.mxu0 0.0
    %716 = vmatpush2.xpose.msra.mxu0 0.0
    %717 = vmatprep.subr.mxu0 0.0
    %718 = vmatpush2.xpose.msra.mxu0 0.0
    %719 = vmatprep.subr.mxu0 0.0
    %720 = vmatpush2.xpose.msra.mxu0 0.0
    %721 = vmatprep.subr.mxu0 0.0
    %722 = vmatpush2.xpose.msra.mxu0 0.0
    %723 = vmatprep.subr.mxu0 0.0
    %724 = vmatpush2.xpose.msra.mxu0 0.0
    %725 = vmatprep.subr.mxu0 0.0
    %726 = vmatpush2.xpose.msra.mxu0 0.0
    %727 = vmatprep.subr.mxu0 0.0
    %728 = vmatpush2.xpose.msra.mxu0 0.0
    %729 = vmatprep.subr.mxu0 0.0
    %730 = vmatpush2.xpose.msra.mxu0 0.0
    %731 = vmatprep.subr.mxu0 0.0
    %732 = vmatpush2.xpose.msra.mxu0 0.0
    %733 = vmatprep.subr.mxu0 0.0
    %734 = vmatpush2.xpose.msra.mxu0 0.0
    %735 = vmatprep.subr.mxu0 0.0
    %736 = vmatpush2.xpose.msra.mxu0 0.0
    %737 = vmatprep.mubr.f32.mxu0 0.0
    %738 = vmatmul.mubr.f32.gmra.mxu0 %v278
    %v739 = vpop.f32.mrf.mxu0
    %v740 = vadd.f32 0.0, %v739
    %v741 = vpop.f32.mrf.mxu0
    %742 = vdwg.mxu0
    %743 = vmatprep.subr.mxu0 0.0
    %744 = vmatpush1.xpose.msra.mxu0 0.0
    %745 = vmatprep.subr.mxu0 0.0
    %746 = vmatpush1.xpose.msra.mxu0 0.0
    %747 = vmatprep.subr.mxu0 0.0
    %748 = vmatpush1.xpose.msra.mxu0 0.0
    %749 = vmatprep.subr.mxu0 0.0
    %750 = vmatpush1.xpose.msra.mxu0 0.0
    %751 = vmatprep.subr.mxu0 0.0
    %752 = vmatpush1.xpose.msra.mxu0 0.0
    %753 = vmatprep.subr.mxu0 0.0
    %754 = vmatpush1.xpose.msra.mxu0 0.0
    %755 = vmatprep.subr.mxu0 0.0
    %756 = vmatpush1.xpose.msra.mxu0 0.0
    %757 = vmatprep.subr.mxu0 0.0
    %758 = vmatpush1.xpose.msra.mxu0 0.0
    %759 = vmatprep.subr.mxu0 0.0
    %760 = vmatpush1.xpose.msra.mxu0 0.0
    %761 = vmatprep.subr.mxu0 0.0
    %762 = vmatpush1.xpose.msra.mxu0 0.0
    %763 = vmatprep.subr.mxu0 0.0
    %764 = vmatpush1.xpose.msra.mxu0 0.0
    %765 = vmatprep.subr.mxu0 0.0
    %766 = vmatpush1.xpose.msra.mxu0 0.0
    %767 = vmatprep.subr.mxu0 0.0
    %768 = vmatpush1.xpose.msra.mxu0 0.0
    %769 = vmatprep.subr.mxu0 0.0
    %770 = vmatpush1.xpose.msra.mxu0 0.0
    %771 = vmatprep.subr.mxu0 0.0
    %772 = vmatpush1.xpose.msra.mxu0 0.0
    %773 = vmatprep.subr.mxu0 0.0
    %774 = vmatpush1.xpose.msra.mxu0 %v438
    %775 = vmatprep.subr.mxu0 0.0
    %776 = vmatpush2.xpose.msra.mxu0 0.0
    %777 = vmatprep.subr.mxu0 0.0
    %778 = vmatpush2.xpose.msra.mxu0 0.0
    %779 = vmatprep.subr.mxu0 0.0
    %780 = vmatpush2.xpose.msra.mxu0 0.0
    %781 = vmatprep.subr.mxu0 0.0
    %782 = vmatpush2.xpose.msra.mxu0 0.0
    %783 = vmatprep.subr.mxu0 0.0
    %784 = vmatpush2.xpose.msra.mxu0 0.0
    %785 = vmatprep.subr.mxu0 0.0
    %786 = vmatpush2.xpose.msra.mxu0 0.0
    %787 = vmatprep.subr.mxu0 0.0
    %788 = vmatpush2.xpose.msra.mxu0 0.0
    %789 = vmatprep.subr.mxu0 0.0
    %790 = vmatpush2.xpose.msra.mxu0 0.0
    %791 = vmatprep.subr.mxu0 0.0
    %792 = vmatpush2.xpose.msra.mxu0 0.0
    %793 = vmatprep.subr.mxu0 0.0
    %794 = vmatpush2.xpose.msra.mxu0 0.0
    %795 = vmatprep.subr.mxu0 0.0
    %796 = vmatpush2.xpose.msra.mxu0 0.0
    %797 = vmatprep.subr.mxu0 0.0
    %798 = vmatpush2.xpose.msra.mxu0 0.0
    %799 = vmatprep.subr.mxu0 0.0
    %800 = vmatpush2.xpose.msra.mxu0 0.0
    %801 = vmatprep.subr.mxu0 0.0
    %802 = vmatpush2.xpose.msra.mxu0 0.0
    %803 = vmatprep.subr.mxu0 0.0
    %804 = vmatpush2.xpose.msra.mxu0 0.0
    %805 = vmatprep.subr.mxu0 0.0
    %806 = vmatpush2.xpose.msra.mxu0 0.0
    %807 = vmatprep.mubr.f32.mxu0 0.0
    %808 = vmatmul.mubr.f32.gmra.mxu0 %v284
    %v809 = vpop.f32.mrf.mxu0
    %v810 = vadd.f32 0.0, %v809
    %v811 = vpop.f32.mrf.mxu0
    %812 = vdwg.mxu0
    %vm813 = vcmask 64512
    %v814 = vsel %vm813, %v740, -inf
    %815 = vmax.xlane.f32.xlu0 %v814
    %v816 = vpop.xlane.xlu0 %815
    %v817 = vsel %vm813, %v810, -inf
    %818 = vmax.xlane.f32.xlu0 %v817
    %v819 = vpop.xlane.xlu0 %818
    %v820 = vsub.f32 %v740, %v816
    %v821 = vsub.f32 %v810, %v819
    %v822 = vmul.f32 %v820, 1.442695
    %v823 = vpow.pop %v822
    %v824 = vmul.f32 %v821, 1.442695
    %v825 = vpow.pop %v824
    %v826 = vsel %vm813, %v823, 0.0
    %827 = vadd.xlane.f32.xlu0 %v826
    %v828 = vpop.xlane.xlu0 %827
    %v829 = vsel %vm813, %v825, 0.0
    %830 = vadd.xlane.f32.xlu0 %v829
    %v831 = vpop.xlane.xlu0 %830
    %v832 = vrcp.pop %v828
    %v833 = vrcp.pop %v831
    %v834 = vmul.f32 %v823, %v832
    %v835 = vmul.f32 %v825, %v833
    %v837 = vsel %vm813, %v834, 0
    %839 = vmatprep.subr.mxu0 0.0
    %840 = vmatpush1.msra.mxu0 0.0
    %841 = vmatprep.subr.mxu0 0.0
    %842 = vmatpush1.msra.mxu0 0.0
    %843 = vmatprep.subr.mxu0 0.0
    %844 = vmatpush1.msra.mxu0 0.0
    %845 = vmatprep.subr.mxu0 0.0
    %846 = vmatpush1.msra.mxu0 0.0
    %847 = vmatprep.subr.mxu0 0.0
    %848 = vmatpush1.msra.mxu0 0.0
    %849 = vmatprep.subr.mxu0 0.0
    %850 = vmatpush1.msra.mxu0 0.0
    %851 = vmatprep.subr.mxu0 0.0
    %852 = vmatpush1.msra.mxu0 0.0
    %853 = vmatprep.subr.mxu0 0.0
    %854 = vmatpush1.msra.mxu0 0.0
    %855 = vmatprep.subr.mxu0 0.0
    %856 = vmatpush1.msra.mxu0 0.0
    %857 = vmatprep.subr.mxu0 0.0
    %858 = vmatpush1.msra.mxu0 0.0
    %859 = vmatprep.subr.mxu0 0.0
    %860 = vmatpush1.msra.mxu0 0.0
    %861 = vmatprep.subr.mxu0 0.0
    %862 = vmatpush1.msra.mxu0 0.0
    %863 = vmatprep.subr.mxu0 0.0
    %864 = vmatpush1.msra.mxu0 0.0
    %865 = vmatprep.subr.mxu0 0.0
    %866 = vmatpush1.msra.mxu0 0.0
    %867 = vmatprep.subr.mxu0 0.0
    %868 = vmatpush1.msra.mxu0 0.0
    %869 = vmatprep.subr.mxu0 0.0
    %870 = vmatpush1.msra.mxu0 %v586
    %871 = vmatprep.subr.mxu0 0.0
    %872 = vmatpush2.msra.mxu0 0.0
    %873 = vmatprep.subr.mxu0 0.0
    %874 = vmatpush2.msra.mxu0 0.0
    %875 = vmatprep.subr.mxu0 0.0
    %876 = vmatpush2.msra.mxu0 0.0
    %877 = vmatprep.subr.mxu0 0.0
    %878 = vmatpush2.msra.mxu0 0.0
    %879 = vmatprep.subr.mxu0 0.0
    %880 = vmatpush2.msra.mxu0 0.0
    %881 = vmatprep.subr.mxu0 0.0
    %882 = vmatpush2.msra.mxu0 0.0
    %883 = vmatprep.subr.mxu0 0.0
    %884 = vmatpush2.msra.mxu0 0.0
    %885 = vmatprep.subr.mxu0 0.0
    %886 = vmatpush2.msra.mxu0 0.0
    %887 = vmatprep.subr.mxu0 0.0
    %888 = vmatpush2.msra.mxu0 0.0
    %889 = vmatprep.subr.mxu0 0.0
    %890 = vmatpush2.msra.mxu0 0.0
    %891 = vmatprep.subr.mxu0 0.0
    %892 = vmatpush2.msra.mxu0 0.0
    %893 = vmatprep.subr.mxu0 0.0
    %894 = vmatpush2.msra.mxu0 0.0
    %895 = vmatprep.subr.mxu0 0.0
    %896 = vmatpush2.msra.mxu0 0.0
    %897 = vmatprep.subr.mxu0 0.0
    %898 = vmatpush2.msra.mxu0 0.0
    %899 = vmatprep.subr.mxu0 0.0
    %900 = vmatpush2.msra.mxu0 0.0
    %901 = vmatprep.subr.mxu0 0.0
    %902 = vmatpush2.msra.mxu0 0.0
    %903 = vmatprep.mubr.f32.mxu0 0.0
    %904 = vmatmul.mubr.f32.gmra.mxu0 %v837
    %v905 = vpop.f32.mrf.mxu0
    %v906 = vadd.f32 0.0, %v905
    %v907 = vpop.f32.mrf.mxu0
    %908 = vdwg.mxu0
    %v910 = vsel %vm813, %v835, 0
    %912 = vmatprep.subr.mxu0 0.0
    %913 = vmatpush1.msra.mxu0 0.0
    %914 = vmatprep.subr.mxu0 0.0
    %915 = vmatpush1.msra.mxu0 0.0
    %916 = vmatprep.subr.mxu0 0.0
    %917 = vmatpush1.msra.mxu0 0.0
    %918 = vmatprep.subr.mxu0 0.0
    %919 = vmatpush1.msra.mxu0 0.0
    %920 = vmatprep.subr.mxu0 0.0
    %921 = vmatpush1.msra.mxu0 0.0
    %922 = vmatprep.subr.mxu0 0.0
    %923 = vmatpush1.msra.mxu0 0.0
    %924 = vmatprep.subr.mxu0 0.0
    %925 = vmatpush1.msra.mxu0 0.0
    %926 = vmatprep.subr.mxu0 0.0
    %927 = vmatpush1.msra.mxu0 0.0
    %928 = vmatprep.subr.mxu0 0.0
    %929 = vmatpush1.msra.mxu0 0.0
    %930 = vmatprep.subr.mxu0 0.0
    %931 = vmatpush1.msra.mxu0 0.0
    %932 = vmatprep.subr.mxu0 0.0
    %933 = vmatpush1.msra.mxu0 0.0
    %934 = vmatprep.subr.mxu0 0.0
    %935 = vmatpush1.msra.mxu0 0.0
    %936 = vmatprep.subr.mxu0 0.0
    %937 = vmatpush1.msra.mxu0 0.0
    %938 = vmatprep.subr.mxu0 0.0
    %939 = vmatpush1.msra.mxu0 0.0
    %940 = vmatprep.subr.mxu0 0.0
    %941 = vmatpush1.msra.mxu0 0.0
    %942 = vmatprep.subr.mxu0 0.0
    %943 = vmatpush1.msra.mxu0 %v592
    %944 = vmatprep.subr.mxu0 0.0
    %945 = vmatpush2.msra.mxu0 0.0
    %946 = vmatprep.subr.mxu0 0.0
    %947 = vmatpush2.msra.mxu0 0.0
    %948 = vmatprep.subr.mxu0 0.0
    %949 = vmatpush2.msra.mxu0 0.0
    %950 = vmatprep.subr.mxu0 0.0
    %951 = vmatpush2.msra.mxu0 0.0
    %952 = vmatprep.subr.mxu0 0.0
    %953 = vmatpush2.msra.mxu0 0.0
    %954 = vmatprep.subr.mxu0 0.0
    %955 = vmatpush2.msra.mxu0 0.0
    %956 = vmatprep.subr.mxu0 0.0
    %957 = vmatpush2.msra.mxu0 0.0
    %958 = vmatprep.subr.mxu0 0.0
    %959 = vmatpush2.msra.mxu0 0.0
    %960 = vmatprep.subr.mxu0 0.0
    %961 = vmatpush2.msra.mxu0 0.0
    %962 = vmatprep.subr.mxu0 0.0
    %963 = vmatpush2.msra.mxu0 0.0
    %964 = vmatprep.subr.mxu0 0.0
    %965 = vmatpush2.msra.mxu0 0.0
    %966 = vmatprep.subr.mxu0 0.0
    %967 = vmatpush2.msra.mxu0 0.0
    %968 = vmatprep.subr.mxu0 0.0
    %969 = vmatpush2.msra.mxu0 0.0
    %970 = vmatprep.subr.mxu0 0.0
    %971 = vmatpush2.msra.mxu0 0.0
    %972 = vmatprep.subr.mxu0 0.0
    %973 = vmatpush2.msra.mxu0 0.0
    %974 = vmatprep.subr.mxu0 0.0
    %975 = vmatpush2.msra.mxu0 0.0
    %976 = vmatprep.mubr.f32.mxu0 0.0
    %977 = vmatmul.mubr.f32.gmra.mxu0 %v910
    %v978 = vpop.f32.mrf.mxu0
    %v979 = vadd.f32 0.0, %v978
    %v980 = vpop.f32.mrf.mxu0
    %981 = vdwg.mxu0
    %v982 = vadd.f32 %v278, %v906
    %v983 = vadd.f32 %v284, %v979
    %984 = vmatprep.subr.mxu0 0.0
    %985 = vmatpush1.xpose.msra.mxu0 0.0
    %986 = vmatprep.subr.mxu0 0.0
    %987 = vmatpush1.xpose.msra.mxu0 0.0
    %988 = vmatprep.subr.mxu0 0.0
    %989 = vmatpush1.xpose.msra.mxu0 0.0
    %990 = vmatprep.subr.mxu0 0.0
    %991 = vmatpush1.xpose.msra.mxu0 0.0
    %992 = vmatprep.subr.mxu0 0.0
    %993 = vmatpush1.xpose.msra.mxu0 0.0
    %994 = vmatprep.subr.mxu0 0.0
    %995 = vmatpush1.xpose.msra.mxu0 0.0
    %996 = vmatprep.subr.mxu0 0.0
    %997 = vmatpush1.xpose.msra.mxu0 0.0
    %998 = vmatprep.subr.mxu0 0.0
    %999 = vmatpush1.xpose.msra.mxu0 0.0
    %1000 = vmatprep.subr.mxu0 0.0
    %1001 = vmatpush1.xpose.msra.mxu0 0.0
    %1002 = vmatprep.subr.mxu0 0.0
    %1003 = vmatpush1.xpose.msra.mxu0 0.0
    %1004 = vmatprep.subr.mxu0 0.0
    %1005 = vmatpush1.xpose.msra.mxu0 0.0
    %1006 = vmatprep.subr.mxu0 0.0
    %1007 = vmatpush1.xpose.msra.mxu0 0.0
    %1008 = vmatprep.subr.mxu0 0.0
    %1009 = vmatpush1.xpose.msra.mxu0 0.0
    %1010 = vmatprep.subr.mxu0 0.0
    %1011 = vmatpush1.xpose.msra.mxu0 0.0
    %1012 = vmatprep.subr.mxu0 0.0
    %1013 = vmatpush1.xpose.msra.mxu0 0.0
    %1014 = vmatprep.subr.mxu0 0.0
    %1015 = vmatpush1.xpose.msra.mxu0 %v434
    %1016 = vmatprep.subr.mxu0 0.0
    %1017 = vmatpush2.xpose.msra.mxu0 0.0
    %1018 = vmatprep.subr.mxu0 0.0
    %1019 = vmatpush2.xpose.msra.mxu0 0.0
    %1020 = vmatprep.subr.mxu0 0.0
    %1021 = vmatpush2.xpose.msra.mxu0 0.0
    %1022 = vmatprep.subr.mxu0 0.0
    %1023 = vmatpush2.xpose.msra.mxu0 0.0
    %1024 = vmatprep.subr.mxu0 0.0
    %1025 = vmatpush2.xpose.msra.mxu0 0.0
    %1026 = vmatprep.subr.mxu0 0.0
    %1027 = vmatpush2.xpose.msra.mxu0 0.0
    %1028 = vmatprep.subr.mxu0 0.0
    %1029 = vmatpush2.xpose.msra.mxu0 0.0
    %1030 = vmatprep.subr.mxu0 0.0
    %1031 = vmatpush2.xpose.msra.mxu0 0.0
    %1032 = vmatprep.subr.mxu0 0.0
    %1033 = vmatpush2.xpose.msra.mxu0 0.0
    %1034 = vmatprep.subr.mxu0 0.0
    %1035 = vmatpush2.xpose.msra.mxu0 0.0
    %1036 = vmatprep.subr.mxu0 0.0
    %1037 = vmatpush2.xpose.msra.mxu0 0.0
    %1038 = vmatprep.subr.mxu0 0.0
    %1039 = vmatpush2.xpose.msra.mxu0 0.0
    %1040 = vmatprep.subr.mxu0 0.0
    %1041 = vmatpush2.xpose.msra.mxu0 0.0
    %1042 = vmatprep.subr.mxu0 0.0
    %1043 = vmatpush2.xpose.msra.mxu0 0.0
    %1044 = vmatprep.subr.mxu0 0.0
    %1045 = vmatpush2.xpose.msra.mxu0 0.0
    %1046 = vmatprep.subr.mxu0 0.0
    %1047 = vmatpush2.xpose.msra.mxu0 0.0
    %1048 = vmatprep.mubr.f32.mxu0 0.0
    %1049 = vmatmul.mubr.f32.gmra.mxu0 %v280
    %v1050 = vpop.f32.mrf.mxu0
    %v1051 = vadd.f32 0.0, %v1050
    %v1052 = vpop.f32.mrf.mxu0
    %1053 = vdwg.mxu0
    %1054 = vmatprep.subr.mxu0 0.0
    %1055 = vmatpush1.xpose.msra.mxu0 0.0
    %1056 = vmatprep.subr.mxu0 0.0
    %1057 = vmatpush1.xpose.msra.mxu0 0.0
    %1058 = vmatprep.subr.mxu0 0.0
    %1059 = vmatpush1.xpose.msra.mxu0 0.0
    %1060 = vmatprep.subr.mxu0 0.0
    %1061 = vmatpush1.xpose.msra.mxu0 0.0
    %1062 = vmatprep.subr.mxu0 0.0
    %1063 = vmatpush1.xpose.msra.mxu0 0.0
    %1064 = vmatprep.subr.mxu0 0.0
    %1065 = vmatpush1.xpose.msra.mxu0 0.0
    %1066 = vmatprep.subr.mxu0 0.0
    %1067 = vmatpush1.xpose.msra.mxu0 0.0
    %1068 = vmatprep.subr.mxu0 0.0
    %1069 = vmatpush1.xpose.msra.mxu0 0.0
    %1070 = vmatprep.subr.mxu0 0.0
    %1071 = vmatpush1.xpose.msra.mxu0 0.0
    %1072 = vmatprep.subr.mxu0 0.0
    %1073 = vmatpush1.xpose.msra.mxu0 0.0
    %1074 = vmatprep.subr.mxu0 0.0
    %1075 = vmatpush1.xpose.msra.mxu0 0.0
    %1076 = vmatprep.subr.mxu0 0.0
    %1077 = vmatpush1.xpose.msra.mxu0 0.0
    %1078 = vmatprep.subr.mxu0 0.0
    %1079 = vmatpush1.xpose.msra.mxu0 0.0
    %1080 = vmatprep.subr.mxu0 0.0
    %1081 = vmatpush1.xpose.msra.mxu0 0.0
    %1082 = vmatprep.subr.mxu0 0.0
    %1083 = vmatpush1.xpose.msra.mxu0 0.0
    %1084 = vmatprep.subr.mxu0 0.0
    %1085 = vmatpush1.xpose.msra.mxu0 %v440
    %1086 = vmatprep.subr.mxu0 0.0
    %1087 = vmatpush2.xpose.msra.mxu0 0.0
    %1088 = vmatprep.subr.mxu0 0.0
    %1089 = vmatpush2.xpose.msra.mxu0 0.0
    %1090 = vmatprep.subr.mxu0 0.0
    %1091 = vmatpush2.xpose.msra.mxu0 0.0
    %1092 = vmatprep.subr.mxu0 0.0
    %1093 = vmatpush2.xpose.msra.mxu0 0.0
    %1094 = vmatprep.subr.mxu0 0.0
    %1095 = vmatpush2.xpose.msra.mxu0 0.0
    %1096 = vmatprep.subr.mxu0 0.0
    %1097 = vmatpush2.xpose.msra.mxu0 0.0
    %1098 = vmatprep.subr.mxu0 0.0
    %1099 = vmatpush2.xpose.msra.mxu0 0.0
    %1100 = vmatprep.subr.mxu0 0.0
    %1101 = vmatpush2.xpose.msra.mxu0 0.0
    %1102 = vmatprep.subr.mxu0 0.0
    %1103 = vmatpush2.xpose.msra.mxu0 0.0
    %1104 = vmatprep.subr.mxu0 0.0
    %1105 = vmatpush2.xpose.msra.mxu0 0.0
    %1106 = vmatprep.subr.mxu0 0.0
    %1107 = vmatpush2.xpose.msra.mxu0 0.0
    %1108 = vmatprep.subr.mxu0 0.0
    %1109 = vmatpush2.xpose.msra.mxu0 0.0
    %1110 = vmatprep.subr.mxu0 0.0
    %1111 = vmatpush2.xpose.msra.mxu0 0.0
    %1112 = vmatprep.subr.mxu0 0.0
    %1113 = vmatpush2.xpose.msra.mxu0 0.0
    %1114 = vmatprep.subr.mxu0 0.0
    %1115 = vmatpush2.xpose.msra.mxu0 0.0
    %1116 = vmatprep.subr.mxu0 0.0
    %1117 = vmatpush2.xpose.msra.mxu0 0.0
    %1118 = vmatprep.mubr.f32.mxu0 0.0
    %1119 = vmatmul.mubr.f32.gmra.mxu0 %v286
    %v1120 = vpop.f32.mrf.mxu0
    %v1121 = vadd.f32 0.0, %v1120
    %v1122 = vpop.f32.mrf.mxu0
    %1123 = vdwg.mxu0
    %v1124 = vsel %vm813, %v1051, -inf
    %1125 = vmax.xlane.f32.xlu0 %v1124
    %v1126 = vpop.xlane.xlu0 %1125
    %v1127 = vsel %vm813, %v1121, -inf
    %1128 = vmax.xlane.f32.xlu0 %v1127
    %v1129 = vpop.xlane.xlu0 %1128
    %v1130 = vsub.f32 %v1051, %v1126
    %v1131 = vsub.f32 %v1121, %v1129
    %v1132 = vmul.f32 %v1130, 1.442695
    %v1133 = vpow.pop %v1132
    %v1134 = vmul.f32 %v1131, 1.442695
    %v1135 = vpow.pop %v1134
    %v1136 = vsel %vm813, %v1133, 0.0
    %1137 = vadd.xlane.f32.xlu0 %v1136
    %v1138 = vpop.xlane.xlu0 %1137
    %v1139 = vsel %vm813, %v1135, 0.0
    %1140 = vadd.xlane.f32.xlu0 %v1139
    %v1141 = vpop.xlane.xlu0 %1140
    %v1142 = vrcp.pop %v1138
    %v1143 = vrcp.pop %v1141
    %v1144 = vmul.f32 %v1133, %v1142
    %v1145 = vmul.f32 %v1135, %v1143
    %v1147 = vsel %vm813, %v1144, 0
    %1149 = vmatprep.subr.mxu0 0.0
    %1150 = vmatpush1.msra.mxu0 0.0
    %1151 = vmatprep.subr.mxu0 0.0
    %1152 = vmatpush1.msra.mxu0 0.0
    %1153 = vmatprep.subr.mxu0 0.0
    %1154 = vmatpush1.msra.mxu0 0.0
    %1155 = vmatprep.subr.mxu0 0.0
    %1156 = vmatpush1.msra.mxu0 0.0
    %1157 = vmatprep.subr.mxu0 0.0
    %1158 = vmatpush1.msra.mxu0 0.0
    %1159 = vmatprep.subr.mxu0 0.0
    %1160 = vmatpush1.msra.mxu0 0.0
    %1161 = vmatprep.subr.mxu0 0.0
    %1162 = vmatpush1.msra.mxu0 0.0
    %1163 = vmatprep.subr.mxu0 0.0
    %1164 = vmatpush1.msra.mxu0 0.0
    %1165 = vmatprep.subr.mxu0 0.0
    %1166 = vmatpush1.msra.mxu0 0.0
    %1167 = vmatprep.subr.mxu0 0.0
    %1168 = vmatpush1.msra.mxu0 0.0
    %1169 = vmatprep.subr.mxu0 0.0
    %1170 = vmatpush1.msra.mxu0 0.0
    %1171 = vmatprep.subr.mxu0 0.0
    %1172 = vmatpush1.msra.mxu0 0.0
    %1173 = vmatprep.subr.mxu0 0.0
    %1174 = vmatpush1.msra.mxu0 0.0
    %1175 = vmatprep.subr.mxu0 0.0
    %1176 = vmatpush1.msra.mxu0 0.0
    %1177 = vmatprep.subr.mxu0 0.0
    %1178 = vmatpush1.msra.mxu0 0.0
    %1179 = vmatprep.subr.mxu0 0.0
    %1180 = vmatpush1.msra.mxu0 %v588
    %1181 = vmatprep.subr.mxu0 0.0
    %1182 = vmatpush2.msra.mxu0 0.0
    %1183 = vmatprep.subr.mxu0 0.0
    %1184 = vmatpush2.msra.mxu0 0.0
    %1185 = vmatprep.subr.mxu0 0.0
    %1186 = vmatpush2.msra.mxu0 0.0
    %1187 = vmatprep.subr.mxu0 0.0
    %1188 = vmatpush2.msra.mxu0 0.0
    %1189 = vmatprep.subr.mxu0 0.0
    %1190 = vmatpush2.msra.mxu0 0.0
    %1191 = vmatprep.subr.mxu0 0.0
    %1192 = vmatpush2.msra.mxu0 0.0
    %1193 = vmatprep.subr.mxu0 0.0
    %1194 = vmatpush2.msra.mxu0 0.0
    %1195 = vmatprep.subr.mxu0 0.0
    %1196 = vmatpush2.msra.mxu0 0.0
    %1197 = vmatprep.subr.mxu0 0.0
    %1198 = vmatpush2.msra.mxu0 0.0
    %1199 = vmatprep.subr.mxu0 0.0
    %1200 = vmatpush2.msra.mxu0 0.0
    %1201 = vmatprep.subr.mxu0 0.0
    %1202 = vmatpush2.msra.mxu0 0.0
    %1203 = vmatprep.subr.mxu0 0.0
    %1204 = vmatpush2.msra.mxu0 0.0
    %1205 = vmatprep.subr.mxu0 0.0
    %1206 = vmatpush2.msra.mxu0 0.0
    %1207 = vmatprep.subr.mxu0 0.0
    %1208 = vmatpush2.msra.mxu0 0.0
    %1209 = vmatprep.subr.mxu0 0.0
    %1210 = vmatpush2.msra.mxu0 0.0
    %1211 = vmatprep.subr.mxu0 0.0
    %1212 = vmatpush2.msra.mxu0 0.0
    %1213 = vmatprep.mubr.f32.mxu0 0.0
    %1214 = vmatmul.mubr.f32.gmra.mxu0 %v1147
    %v1215 = vpop.f32.mrf.mxu0
    %v1216 = vadd.f32 0.0, %v1215
    %v1217 = vpop.f32.mrf.mxu0
    %1218 = vdwg.mxu0
    %v1220 = vsel %vm813, %v1145, 0
    %1222 = vmatprep.subr.mxu0 0.0
    %1223 = vmatpush1.msra.mxu0 0.0
    %1224 = vmatprep.subr.mxu0 0.0
    %1225 = vmatpush1.msra.mxu0 0.0
    %1226 = vmatprep.subr.mxu0 0.0
    %1227 = vmatpush1.msra.mxu0 0.0
    %1228 = vmatprep.subr.mxu0 0.0
    %1229 = vmatpush1.msra.mxu0 0.0
    %1230 = vmatprep.subr.mxu0 0.0
    %1231 = vmatpush1.msra.mxu0 0.0
    %1232 = vmatprep.subr.mxu0 0.0
    %1233 = vmatpush1.msra.mxu0 0.0
    %1234 = vmatprep.subr.mxu0 0.0
    %1235 = vmatpush1.msra.mxu0 0.0
    %1236 = vmatprep.subr.mxu0 0.0
    %1237 = vmatpush1.msra.mxu0 0.0
    %1238 = vmatprep.subr.mxu0 0.0
    %1239 = vmatpush1.msra.mxu0 0.0
    %1240 = vmatprep.subr.mxu0 0.0
    %1241 = vmatpush1.msra.mxu0 0.0
    %1242 = vmatprep.subr.mxu0 0.0
    %1243 = vmatpush1.msra.mxu0 0.0
    %1244 = vmatprep.subr.mxu0 0.0
    %1245 = vmatpush1.msra.mxu0 0.0
    %1246 = vmatprep.subr.mxu0 0.0
    %1247 = vmatpush1.msra.mxu0 0.0
    %1248 = vmatprep.subr.mxu0 0.0
    %1249 = vmatpush1.msra.mxu0 0.0
    %1250 = vmatprep.subr.mxu0 0.0
    %1251 = vmatpush1.msra.mxu0 0.0
    %1252 = vmatprep.subr.mxu0 0.0
    %1253 = vmatpush1.msra.mxu0 %v594
    %1254 = vmatprep.subr.mxu0 0.0
    %1255 = vmatpush2.msra.mxu0 0.0
    %1256 = vmatprep.subr.mxu0 0.0
    %1257 = vmatpush2.msra.mxu0 0.0
    %1258 = vmatprep.subr.mxu0 0.0
    %1259 = vmatpush2.msra.mxu0 0.0
    %1260 = vmatprep.subr.mxu0 0.0
    %1261 = vmatpush2.msra.mxu0 0.0
    %1262 = vmatprep.subr.mxu0 0.0
    %1263 = vmatpush2.msra.mxu0 0.0
    %1264 = vmatprep.subr.mxu0 0.0
    %1265 = vmatpush2.msra.mxu0 0.0
    %1266 = vmatprep.subr.mxu0 0.0
    %1267 = vmatpush2.msra.mxu0 0.0
    %1268 = vmatprep.subr.mxu0 0.0
    %1269 = vmatpush2.msra.mxu0 0.0
    %1270 = vmatprep.subr.mxu0 0.0
    %1271 = vmatpush2.msra.mxu0 0.0
    %1272 = vmatprep.subr.mxu0 0.0
    %1273 = vmatpush2.msra.mxu0 0.0
    %1274 = vmatprep.subr.mxu0 0.0
    %1275 = vmatpush2.msra.mxu0 0.0
    %1276 = vmatprep.subr.mxu0 0.0
    %1277 = vmatpush2.msra.mxu0 0.0
    %1278 = vmatprep.subr.mxu0 0.0
    %1279 = vmatpush2.msra.mxu0 0.0
    %1280 = vmatprep.subr.mxu0 0.0
    %1281 = vmatpush2.msra.mxu0 0.0
    %1282 = vmatprep.subr.mxu0 0.0
    %1283 = vmatpush2.msra.mxu0 0.0
    %1284 = vmatprep.subr.mxu0 0.0
    %1285 = vmatpush2.msra.mxu0 0.0
    %1286 = vmatprep.mubr.f32.mxu0 0.0
    %1287 = vmatmul.mubr.f32.gmra.mxu0 %v1220
    %v1288 = vpop.f32.mrf.mxu0
    %v1289 = vadd.f32 0.0, %v1288
    %v1290 = vpop.f32.mrf.mxu0
    %1291 = vdwg.mxu0
    %v1292 = vadd.f32 %v280, %v1216
    %v1293 = vadd.f32 %v286, %v1289
    %1294 = vmatprep.subr.mxu0 0.0
    %1295 = vmatpush1.xpose.msra.mxu0 0.0
    %1296 = vmatprep.subr.mxu0 0.0
    %1297 = vmatpush1.xpose.msra.mxu0 0.0
    %1298 = vmatprep.subr.mxu0 0.0
    %1299 = vmatpush1.xpose.msra.mxu0 0.0
    %1300 = vmatprep.subr.mxu0 0.0
    %1301 = vmatpush1.xpose.msra.mxu0 0.0
    %1302 = vmatprep.subr.mxu0 0.0
    %1303 = vmatpush1.xpose.msra.mxu0 0.0
    %1304 = vmatprep.subr.mxu0 0.0
    %1305 = vmatpush1.xpose.msra.mxu0 0.0
    %1306 = vmatprep.subr.mxu0 0.0
    %1307 = vmatpush1.xpose.msra.mxu0 0.0
    %1308 = vmatprep.subr.mxu0 0.0
    %1309 = vmatpush1.xpose.msra.mxu0 0.0
    %1310 = vmatprep.subr.mxu0 0.0
    %1311 = vmatpush1.xpose.msra.mxu0 0.0
    %1312 = vmatprep.subr.mxu0 0.0
    %1313 = vmatpush1.xpose.msra.mxu0 0.0
    %1314 = vmatprep.subr.mxu0 0.0
    %1315 = vmatpush1.xpose.msra.mxu0 0.0
    %1316 = vmatprep.subr.mxu0 0.0
    %1317 = vmatpush1.xpose.msra.mxu0 0.0
    %1318 = vmatprep.subr.mxu0 0.0
    %1319 = vmatpush1.xpose.msra.mxu0 0.0
    %1320 = vmatprep.subr.mxu0 0.0
    %1321 = vmatpush1.xpose.msra.mxu0 0.0
    %1322 = vmatprep.subr.mxu0 0.0
    %1323 = vmatpush1.xpose.msra.mxu0 0.0
    %1324 = vmatprep.subr.mxu0 0.0
    %1325 = vmatpush1.xpose.msra.mxu0 %v509
    %1326 = vmatprep.subr.mxu0 0.0
    %1327 = vmatpush2.xpose.msra.mxu0 0.0
    %1328 = vmatprep.subr.mxu0 0.0
    %1329 = vmatpush2.xpose.msra.mxu0 0.0
    %1330 = vmatprep.subr.mxu0 0.0
    %1331 = vmatpush2.xpose.msra.mxu0 0.0
    %1332 = vmatprep.subr.mxu0 0.0
    %1333 = vmatpush2.xpose.msra.mxu0 0.0
    %1334 = vmatprep.subr.mxu0 0.0
    %1335 = vmatpush2.xpose.msra.mxu0 0.0
    %1336 = vmatprep.subr.mxu0 0.0
    %1337 = vmatpush2.xpose.msra.mxu0 0.0
    %1338 = vmatprep.subr.mxu0 0.0
    %1339 = vmatpush2.xpose.msra.mxu0 0.0
    %1340 = vmatprep.subr.mxu0 0.0
    %1341 = vmatpush2.xpose.msra.mxu0 0.0
    %1342 = vmatprep.subr.mxu0 0.0
    %1343 = vmatpush2.xpose.msra.mxu0 0.0
    %1344 = vmatprep.subr.mxu0 0.0
    %1345 = vmatpush2.xpose.msra.mxu0 0.0
    %1346 = vmatprep.subr.mxu0 0.0
    %1347 = vmatpush2.xpose.msra.mxu0 0.0
    %1348 = vmatprep.subr.mxu0 0.0
    %1349 = vmatpush2.xpose.msra.mxu0 0.0
    %1350 = vmatprep.subr.mxu0 0.0
    %1351 = vmatpush2.xpose.msra.mxu0 0.0
    %1352 = vmatprep.subr.mxu0 0.0
    %1353 = vmatpush2.xpose.msra.mxu0 0.0
    %1354 = vmatprep.subr.mxu0 0.0
    %1355 = vmatpush2.xpose.msra.mxu0 0.0
    %1356 = vmatprep.subr.mxu0 0.0
    %1357 = vmatpush2.xpose.msra.mxu0 0.0
    %1358 = vmatprep.mubr.f32.mxu0 0.0
    %1359 = vmatmul.mubr.f32.gmra.mxu0 %v355
    %v1360 = vpop.f32.mrf.mxu0
    %v1361 = vadd.f32 0.0, %v1360
    %v1362 = vpop.f32.mrf.mxu0
    %1363 = vdwg.mxu0
    %1364 = vmatprep.subr.mxu0 0.0
    %1365 = vmatpush1.xpose.msra.mxu0 0.0
    %1366 = vmatprep.subr.mxu0 0.0
    %1367 = vmatpush1.xpose.msra.mxu0 0.0
    %1368 = vmatprep.subr.mxu0 0.0
    %1369 = vmatpush1.xpose.msra.mxu0 0.0
    %1370 = vmatprep.subr.mxu0 0.0
    %1371 = vmatpush1.xpose.msra.mxu0 0.0
    %1372 = vmatprep.subr.mxu0 0.0
    %1373 = vmatpush1.xpose.msra.mxu0 0.0
    %1374 = vmatprep.subr.mxu0 0.0
    %1375 = vmatpush1.xpose.msra.mxu0 0.0
    %1376 = vmatprep.subr.mxu0 0.0
    %1377 = vmatpush1.xpose.msra.mxu0 0.0
    %1378 = vmatprep.subr.mxu0 0.0
    %1379 = vmatpush1.xpose.msra.mxu0 0.0
    %1380 = vmatprep.subr.mxu0 0.0
    %1381 = vmatpush1.xpose.msra.mxu0 0.0
    %1382 = vmatprep.subr.mxu0 0.0
    %1383 = vmatpush1.xpose.msra.mxu0 0.0
    %1384 = vmatprep.subr.mxu0 0.0
    %1385 = vmatpush1.xpose.msra.mxu0 0.0
    %1386 = vmatprep.subr.mxu0 0.0
    %1387 = vmatpush1.xpose.msra.mxu0 0.0
    %1388 = vmatprep.subr.mxu0 0.0
    %1389 = vmatpush1.xpose.msra.mxu0 0.0
    %1390 = vmatprep.subr.mxu0 0.0
    %1391 = vmatpush1.xpose.msra.mxu0 0.0
    %1392 = vmatprep.subr.mxu0 0.0
    %1393 = vmatpush1.xpose.msra.mxu0 0.0
    %1394 = vmatprep.subr.mxu0 0.0
    %1395 = vmatpush1.xpose.msra.mxu0 %v515
    %1396 = vmatprep.subr.mxu0 0.0
    %1397 = vmatpush2.xpose.msra.mxu0 0.0
    %1398 = vmatprep.subr.mxu0 0.0
    %1399 = vmatpush2.xpose.msra.mxu0 0.0
    %1400 = vmatprep.subr.mxu0 0.0
    %1401 = vmatpush2.xpose.msra.mxu0 0.0
    %1402 = vmatprep.subr.mxu0 0.0
    %1403 = vmatpush2.xpose.msra.mxu0 0.0
    %1404 = vmatprep.subr.mxu0 0.0
    %1405 = vmatpush2.xpose.msra.mxu0 0.0
    %1406 = vmatprep.subr.mxu0 0.0
    %1407 = vmatpush2.xpose.msra.mxu0 0.0
    %1408 = vmatprep.subr.mxu0 0.0
    %1409 = vmatpush2.xpose.msra.mxu0 0.0
    %1410 = vmatprep.subr.mxu0 0.0
    %1411 = vmatpush2.xpose.msra.mxu0 0.0
    %1412 = vmatprep.subr.mxu0 0.0
    %1413 = vmatpush2.xpose.msra.mxu0 0.0
    %1414 = vmatprep.subr.mxu0 0.0
    %1415 = vmatpush2.xpose.msra.mxu0 0.0
    %1416 = vmatprep.subr.mxu0 0.0
    %1417 = vmatpush2.xpose.msra.mxu0 0.0
    %1418 = vmatprep.subr.mxu0 0.0
    %1419 = vmatpush2.xpose.msra.mxu0 0.0
    %1420 = vmatprep.subr.mxu0 0.0
    %1421 = vmatpush2.xpose.msra.mxu0 0.0
    %1422 = vmatprep.subr.mxu0 0.0
    %1423 = vmatpush2.xpose.msra.mxu0 0.0
    %1424 = vmatprep.subr.mxu0 0.0
    %1425 = vmatpush2.xpose.msra.mxu0 0.0
    %1426 = vmatprep.subr.mxu0 0.0
    %1427 = vmatpush2.xpose.msra.mxu0 0.0
    %1428 = vmatprep.mubr.f32.mxu0 0.0
    %1429 = vmatmul.mubr.f32.gmra.mxu0 %v361
    %v1430 = vpop.f32.mrf.mxu0
    %v1431 = vadd.f32 0.0, %v1430
    %v1432 = vpop.f32.mrf.mxu0
    %1433 = vdwg.mxu0
    %v1434 = vsel %vm813, %v1361, -inf
    %1435 = vmax.xlane.f32.xlu0 %v1434
    %v1436 = vpop.xlane.xlu0 %1435
    %v1437 = vsel %vm813, %v1431, -inf
    %1438 = vmax.xlane.f32.xlu0 %v1437
    %v1439 = vpop.xlane.xlu0 %1438
    %v1440 = vsub.f32 %v1361, %v1436
    %v1441 = vsub.f32 %v1431, %v1439
    %v1442 = vmul.f32 %v1440, 1.442695
    %v1443 = vpow.pop %v1442
    %v1444 = vmul.f32 %v1441, 1.442695
    %v1445 = vpow.pop %v1444
    %v1446 = vsel %vm813, %v1443, 0.0
    %1447 = vadd.xlane.f32.xlu0 %v1446
    %v1448 = vpop.xlane.xlu0 %1447
    %v1449 = vsel %vm813, %v1445, 0.0
    %1450 = vadd.xlane.f32.xlu0 %v1449
    %v1451 = vpop.xlane.xlu0 %1450
    %v1452 = vrcp.pop %v1448
    %v1453 = vrcp.pop %v1451
    %v1454 = vmul.f32 %v1443, %v1452
    %v1455 = vmul.f32 %v1445, %v1453
    %v1457 = vsel %vm813, %v1454, 0
    %1459 = vmatprep.subr.mxu0 0.0
    %1460 = vmatpush1.msra.mxu0 0.0
    %1461 = vmatprep.subr.mxu0 0.0
    %1462 = vmatpush1.msra.mxu0 0.0
    %1463 = vmatprep.subr.mxu0 0.0
    %1464 = vmatpush1.msra.mxu0 0.0
    %1465 = vmatprep.subr.mxu0 0.0
    %1466 = vmatpush1.msra.mxu0 0.0
    %1467 = vmatprep.subr.mxu0 0.0
    %1468 = vmatpush1.msra.mxu0 0.0
    %1469 = vmatprep.subr.mxu0 0.0
    %1470 = vmatpush1.msra.mxu0 0.0
    %1471 = vmatprep.subr.mxu0 0.0
    %1472 = vmatpush1.msra.mxu0 0.0
    %1473 = vmatprep.subr.mxu0 0.0
    %1474 = vmatpush1.msra.mxu0 0.0
    %1475 = vmatprep.subr.mxu0 0.0
    %1476 = vmatpush1.msra.mxu0 0.0
    %1477 = vmatprep.subr.mxu0 0.0
    %1478 = vmatpush1.msra.mxu0 0.0
    %1479 = vmatprep.subr.mxu0 0.0
    %1480 = vmatpush1.msra.mxu0 0.0
    %1481 = vmatprep.subr.mxu0 0.0
    %1482 = vmatpush1.msra.mxu0 0.0
    %1483 = vmatprep.subr.mxu0 0.0
    %1484 = vmatpush1.msra.mxu0 0.0
    %1485 = vmatprep.subr.mxu0 0.0
    %1486 = vmatpush1.msra.mxu0 0.0
    %1487 = vmatprep.subr.mxu0 0.0
    %1488 = vmatpush1.msra.mxu0 0.0
    %1489 = vmatprep.subr.mxu0 0.0
    %1490 = vmatpush1.msra.mxu0 %v663
    %1491 = vmatprep.subr.mxu0 0.0
    %1492 = vmatpush2.msra.mxu0 0.0
    %1493 = vmatprep.subr.mxu0 0.0
    %1494 = vmatpush2.msra.mxu0 0.0
    %1495 = vmatprep.subr.mxu0 0.0
    %1496 = vmatpush2.msra.mxu0 0.0
    %1497 = vmatprep.subr.mxu0 0.0
    %1498 = vmatpush2.msra.mxu0 0.0
    %1499 = vmatprep.subr.mxu0 0.0
    %1500 = vmatpush2.msra.mxu0 0.0
    %1501 = vmatprep.subr.mxu0 0.0
    %1502 = vmatpush2.msra.mxu0 0.0
    %1503 = vmatprep.subr.mxu0 0.0
    %1504 = vmatpush2.msra.mxu0 0.0
    %1505 = vmatprep.subr.mxu0 0.0
    %1506 = vmatpush2.msra.mxu0 0.0
    %1507 = vmatprep.subr.mxu0 0.0
    %1508 = vmatpush2.msra.mxu0 0.0
    %1509 = vmatprep.subr.mxu0 0.0
    %1510 = vmatpush2.msra.mxu0 0.0
    %1511 = vmatprep.subr.mxu0 0.0
    %1512 = vmatpush2.msra.mxu0 0.0
    %1513 = vmatprep.subr.mxu0 0.0
    %1514 = vmatpush2.msra.mxu0 0.0
    %1515 = vmatprep.subr.mxu0 0.0
    %1516 = vmatpush2.msra.mxu0 0.0
    %1517 = vmatprep.subr.mxu0 0.0
    %1518 = vmatpush2.msra.mxu0 0.0
    %1519 = vmatprep.subr.mxu0 0.0
    %1520 = vmatpush2.msra.mxu0 0.0
    %1521 = vmatprep.subr.mxu0 0.0
    %1522 = vmatpush2.msra.mxu0 0.0
    %1523 = vmatprep.mubr.f32.mxu0 0.0
    %1524 = vmatmul.mubr.f32.gmra.mxu0 %v1457
    %v1525 = vpop.f32.mrf.mxu0
    %v1526 = vadd.f32 0.0, %v1525
    %v1527 = vpop.f32.mrf.mxu0
    %1528 = vdwg.mxu0
    %v1530 = vsel %vm813, %v1455, 0
    %1532 = vmatprep.subr.mxu0 0.0
    %1533 = vmatpush1.msra.mxu0 0.0
    %1534 = vmatprep.subr.mxu0 0.0
    %1535 = vmatpush1.msra.mxu0 0.0
    %1536 = vmatprep.subr.mxu0 0.0
    %1537 = vmatpush1.msra.mxu0 0.0
    %1538 = vmatprep.subr.mxu0 0.0
    %1539 = vmatpush1.msra.mxu0 0.0
    %1540 = vmatprep.subr.mxu0 0.0
    %1541 = vmatpush1.msra.mxu0 0.0
    %1542 = vmatprep.subr.mxu0 0.0
    %1543 = vmatpush1.msra.mxu0 0.0
    %1544 = vmatprep.subr.mxu0 0.0
    %1545 = vmatpush1.msra.mxu0 0.0
    %1546 = vmatprep.subr.mxu0 0.0
    %1547 = vmatpush1.msra.mxu0 0.0
    %1548 = vmatprep.subr.mxu0 0.0
    %1549 = vmatpush1.msra.mxu0 0.0
    %1550 = vmatprep.subr.mxu0 0.0
    %1551 = vmatpush1.msra.mxu0 0.0
    %1552 = vmatprep.subr.mxu0 0.0
    %1553 = vmatpush1.msra.mxu0 0.0
    %1554 = vmatprep.subr.mxu0 0.0
    %1555 = vmatpush1.msra.mxu0 0.0
    %1556 = vmatprep.subr.mxu0 0.0
    %1557 = vmatpush1.msra.mxu0 0.0
    %1558 = vmatprep.subr.mxu0 0.0
    %1559 = vmatpush1.msra.mxu0 0.0
    %1560 = vmatprep.subr.mxu0 0.0
    %1561 = vmatpush1.msra.mxu0 0.0
    %1562 = vmatprep.subr.mxu0 0.0
    %1563 = vmatpush1.msra.mxu0 %v669
    %1564 = vmatprep.subr.mxu0 0.0
    %1565 = vmatpush2.msra.mxu0 0.0
    %1566 = vmatprep.subr.mxu0 0.0
    %1567 = vmatpush2.msra.mxu0 0.0
    %1568 = vmatprep.subr.mxu0 0.0
    %1569 = vmatpush2.msra.mxu0 0.0
    %1570 = vmatprep.subr.mxu0 0.0
    %1571 = vmatpush2.msra.mxu0 0.0
    %1572 = vmatprep.subr.mxu0 0.0
    %1573 = vmatpush2.msra.mxu0 0.0
    %1574 = vmatprep.subr.mxu0 0.0
    %1575 = vmatpush2.msra.mxu0 0.0
    %1576 = vmatprep.subr.mxu0 0.0
    %1577 = vmatpush2.msra.mxu0 0.0
    %1578 = vmatprep.subr.mxu0 0.0
    %1579 = vmatpush2.msra.mxu0 0.0
    %1580 = vmatprep.subr.mxu0 0.0
    %1581 = vmatpush2.msra.mxu0 0.0
    %1582 = vmatprep.subr.mxu0 0.0
    %1583 = vmatpush2.msra.mxu0 0.0
    %1584 = vmatprep.subr.mxu0 0.0
    %1585 = vmatpush2.msra.mxu0 0.0
    %1586 = vmatprep.subr.mxu0 0.0
    %1587 = vmatpush2.msra.mxu0 0.0
    %1588 = vmatprep.subr.mxu0 0.0
    %1589 = vmatpush2.msra.mxu0 0.0
    %1590 = vmatprep.subr.mxu0 0.0
    %1591 = vmatpush2.msra.mxu0 0.0
    %1592 = vmatprep.subr.mxu0 0.0
    %1593 = vmatpush2.msra.mxu0 0.0
    %1594 = vmatprep.subr.mxu0 0.0
    %1595 = vmatpush2.msra.mxu0 0.0
    %1596 = vmatprep.mubr.f32.mxu0 0.0
    %1597 = vmatmul.mubr.f32.gmra.mxu0 %v1530
    %v1598 = vpop.f32.mrf.mxu0
    %v1599 = vadd.f32 0.0, %v1598
    %v1600 = vpop.f32.mrf.mxu0
    %1601 = vdwg.mxu0
    %v1602 = vadd.f32 %v355, %v1526
    %v1603 = vadd.f32 %v361, %v1599
    %1604 = vmatprep.subr.mxu0 0.0
    %1605 = vmatpush1.xpose.msra.mxu0 0.0
    %1606 = vmatprep.subr.mxu0 0.0
    %1607 = vmatpush1.xpose.msra.mxu0 0.0
    %1608 = vmatprep.subr.mxu0 0.0
    %1609 = vmatpush1.xpose.msra.mxu0 0.0
    %1610 = vmatprep.subr.mxu0 0.0
    %1611 = vmatpush1.xpose.msra.mxu0 0.0
    %1612 = vmatprep.subr.mxu0 0.0
    %1613 = vmatpush1.xpose.msra.mxu0 0.0
    %1614 = vmatprep.subr.mxu0 0.0
    %1615 = vmatpush1.xpose.msra.mxu0 0.0
    %1616 = vmatprep.subr.mxu0 0.0
    %1617 = vmatpush1.xpose.msra.mxu0 0.0
    %1618 = vmatprep.subr.mxu0 0.0
    %1619 = vmatpush1.xpose.msra.mxu0 0.0
    %1620 = vmatprep.subr.mxu0 0.0
    %1621 = vmatpush1.xpose.msra.mxu0 0.0
    %1622 = vmatprep.subr.mxu0 0.0
    %1623 = vmatpush1.xpose.msra.mxu0 0.0
    %1624 = vmatprep.subr.mxu0 0.0
    %1625 = vmatpush1.xpose.msra.mxu0 0.0
    %1626 = vmatprep.subr.mxu0 0.0
    %1627 = vmatpush1.xpose.msra.mxu0 0.0
    %1628 = vmatprep.subr.mxu0 0.0
    %1629 = vmatpush1.xpose.msra.mxu0 0.0
    %1630 = vmatprep.subr.mxu0 0.0
    %1631 = vmatpush1.xpose.msra.mxu0 0.0
    %1632 = vmatprep.subr.mxu0 0.0
    %1633 = vmatpush1.xpose.msra.mxu0 0.0
    %1634 = vmatprep.subr.mxu0 0.0
    %1635 = vmatpush1.xpose.msra.mxu0 %v511
    %1636 = vmatprep.subr.mxu0 0.0
    %1637 = vmatpush2.xpose.msra.mxu0 0.0
    %1638 = vmatprep.subr.mxu0 0.0
    %1639 = vmatpush2.xpose.msra.mxu0 0.0
    %1640 = vmatprep.subr.mxu0 0.0
    %1641 = vmatpush2.xpose.msra.mxu0 0.0
    %1642 = vmatprep.subr.mxu0 0.0
    %1643 = vmatpush2.xpose.msra.mxu0 0.0
    %1644 = vmatprep.subr.mxu0 0.0
    %1645 = vmatpush2.xpose.msra.mxu0 0.0
    %1646 = vmatprep.subr.mxu0 0.0
    %1647 = vmatpush2.xpose.msra.mxu0 0.0
    %1648 = vmatprep.subr.mxu0 0.0
    %1649 = vmatpush2.xpose.msra.mxu0 0.0
    %1650 = vmatprep.subr.mxu0 0.0
    %1651 = vmatpush2.xpose.msra.mxu0 0.0
    %1652 = vmatprep.subr.mxu0 0.0
    %1653 = vmatpush2.xpose.msra.mxu0 0.0
    %1654 = vmatprep.subr.mxu0 0.0
    %1655 = vmatpush2.xpose.msra.mxu0 0.0
    %1656 = vmatprep.subr.mxu0 0.0
    %1657 = vmatpush2.xpose.msra.mxu0 0.0
    %1658 = vmatprep.subr.mxu0 0.0
    %1659 = vmatpush2.xpose.msra.mxu0 0.0
    %1660 = vmatprep.subr.mxu0 0.0
    %1661 = vmatpush2.xpose.msra.mxu0 0.0
    %1662 = vmatprep.subr.mxu0 0.0
    %1663 = vmatpush2.xpose.msra.mxu0 0.0
    %1664 = vmatprep.subr.mxu0 0.0
    %1665 = vmatpush2.xpose.msra.mxu0 0.0
    %1666 = vmatprep.subr.mxu0 0.0
    %1667 = vmatpush2.xpose.msra.mxu0 0.0
    %1668 = vmatprep.mubr.f32.mxu0 0.0
    %1669 = vmatmul.mubr.f32.gmra.mxu0 %v357
    %v1670 = vpop.f32.mrf.mxu0
    %v1671 = vadd.f32 0.0, %v1670
    %v1672 = vpop.f32.mrf.mxu0
    %1673 = vdwg.mxu0
    %1674 = vmatprep.subr.mxu0 0.0
    %1675 = vmatpush1.xpose.msra.mxu0 0.0
    %1676 = vmatprep.subr.mxu0 0.0
    %1677 = vmatpush1.xpose.msra.mxu0 0.0
    %1678 = vmatprep.subr.mxu0 0.0
    %1679 = vmatpush1.xpose.msra.mxu0 0.0
    %1680 = vmatprep.subr.mxu0 0.0
    %1681 = vmatpush1.xpose.msra.mxu0 0.0
    %1682 = vmatprep.subr.mxu0 0.0
    %1683 = vmatpush1.xpose.msra.mxu0 0.0
    %1684 = vmatprep.subr.mxu0 0.0
    %1685 = vmatpush1.xpose.msra.mxu0 0.0
    %1686 = vmatprep.subr.mxu0 0.0
    %1687 = vmatpush1.xpose.msra.mxu0 0.0
    %1688 = vmatprep.subr.mxu0 0.0
    %1689 = vmatpush1.xpose.msra.mxu0 0.0
    %1690 = vmatprep.subr.mxu0 0.0
    %1691 = vmatpush1.xpose.msra.mxu0 0.0
    %1692 = vmatprep.subr.mxu0 0.0
    %1693 = vmatpush1.xpose.msra.mxu0 0.0
    %1694 = vmatprep.subr.mxu0 0.0
    %1695 = vmatpush1.xpose.msra.mxu0 0.0
    %1696 = vmatprep.subr.mxu0 0.0
    %1697 = vmatpush1.xpose.msra.mxu0 0.0
    %1698 = vmatprep.subr.mxu0 0.0
    %1699 = vmatpush1.xpose.msra.mxu0 0.0
    %1700 = vmatprep.subr.mxu0 0.0
    %1701 = vmatpush1.xpose.msra.mxu0 0.0
    %1702 = vmatprep.subr.mxu0 0.0
    %1703 = vmatpush1.xpose.msra.mxu0 0.0
    %1704 = vmatprep.subr.mxu0 0.0
    %1705 = vmatpush1.xpose.msra.mxu0 %v517
    %1706 = vmatprep.subr.mxu0 0.0
    %1707 = vmatpush2.xpose.msra.mxu0 0.0
    %1708 = vmatprep.subr.mxu0 0.0
    %1709 = vmatpush2.xpose.msra.mxu0 0.0
    %1710 = vmatprep.subr.mxu0 0.0
    %1711 = vmatpush2.xpose.msra.mxu0 0.0
    %1712 = vmatprep.subr.mxu0 0.0
    %1713 = vmatpush2.xpose.msra.mxu0 0.0
    %1714 = vmatprep.subr.mxu0 0.0
    %1715 = vmatpush2.xpose.msra.mxu0 0.0
    %1716 = vmatprep.subr.mxu0 0.0
    %1717 = vmatpush2.xpose.msra.mxu0 0.0
    %1718 = vmatprep.subr.mxu0 0.0
    %1719 = vmatpush2.xpose.msra.mxu0 0.0
    %1720 = vmatprep.subr.mxu0 0.0
    %1721 = vmatpush2.xpose.msra.mxu0 0.0
    %1722 = vmatprep.subr.mxu0 0.0
    %1723 = vmatpush2.xpose.msra.mxu0 0.0
    %1724 = vmatprep.subr.mxu0 0.0
    %1725 = vmatpush2.xpose.msra.mxu0 0.0
    %1726 = vmatprep.subr.mxu0 0.0
    %1727 = vmatpush2.xpose.msra.mxu0 0.0
    %1728 = vmatprep.subr.mxu0 0.0
    %1729 = vmatpush2.xpose.msra.mxu0 0.0
    %1730 = vmatprep.subr.mxu0 0.0
    %1731 = vmatpush2.xpose.msra.mxu0 0.0
    %1732 = vmatprep.subr.mxu0 0.0
    %1733 = vmatpush2.xpose.msra.mxu0 0.0
    %1734 = vmatprep.subr.mxu0 0.0
    %1735 = vmatpush2.xpose.msra.mxu0 0.0
    %1736 = vmatprep.subr.mxu0 0.0
    %1737 = vmatpush2.xpose.msra.mxu0 0.0
    %1738 = vmatprep.mubr.f32.mxu0 0.0
    %1739 = vmatmul.mubr.f32.gmra.mxu0 %v363
    %v1740 = vpop.f32.mrf.mxu0
    %v1741 = vadd.f32 0.0, %v1740
    %v1742 = vpop.f32.mrf.mxu0
    %1743 = vdwg.mxu0
    %v1744 = vsel %vm813, %v1671, -inf
    %1745 = vmax.xlane.f32.xlu0 %v1744
    %v1746 = vpop.xlane.xlu0 %1745
    %v1747 = vsel %vm813, %v1741, -inf
    %1748 = vmax.xlane.f32.xlu0 %v1747
    %v1749 = vpop.xlane.xlu0 %1748
    %v1750 = vsub.f32 %v1671, %v1746
    %v1751 = vsub.f32 %v1741, %v1749
    %v1752 = vmul.f32 %v1750, 1.442695
    %v1753 = vpow.pop %v1752
    %v1754 = vmul.f32 %v1751, 1.442695
    %v1755 = vpow.pop %v1754
    %v1756 = vsel %vm813, %v1753, 0.0
    %1757 = vadd.xlane.f32.xlu0 %v1756
    %v1758 = vpop.xlane.xlu0 %1757
    %v1759 = vsel %vm813, %v1755, 0.0
    %1760 = vadd.xlane.f32.xlu0 %v1759
    %v1761 = vpop.xlane.xlu0 %1760
    %v1762 = vrcp.pop %v1758
    %v1763 = vrcp.pop %v1761
    %v1764 = vmul.f32 %v1753, %v1762
    %v1765 = vmul.f32 %v1755, %v1763
    %v1767 = vsel %vm813, %v1764, 0
    %1769 = vmatprep.subr.mxu0 0.0
    %1770 = vmatpush1.msra.mxu0 0.0
    %1771 = vmatprep.subr.mxu0 0.0
    %1772 = vmatpush1.msra.mxu0 0.0
    %1773 = vmatprep.subr.mxu0 0.0
    %1774 = vmatpush1.msra.mxu0 0.0
    %1775 = vmatprep.subr.mxu0 0.0
    %1776 = vmatpush1.msra.mxu0 0.0
    %1777 = vmatprep.subr.mxu0 0.0
    %1778 = vmatpush1.msra.mxu0 0.0
    %1779 = vmatprep.subr.mxu0 0.0
    %1780 = vmatpush1.msra.mxu0 0.0
    %1781 = vmatprep.subr.mxu0 0.0
    %1782 = vmatpush1.msra.mxu0 0.0
    %1783 = vmatprep.subr.mxu0 0.0
    %1784 = vmatpush1.msra.mxu0 0.0
    %1785 = vmatprep.subr.mxu0 0.0
    %1786 = vmatpush1.msra.mxu0 0.0
    %1787 = vmatprep.subr.mxu0 0.0
    %1788 = vmatpush1.msra.mxu0 0.0
    %1789 = vmatprep.subr.mxu0 0.0
    %1790 = vmatpush1.msra.mxu0 0.0
    %1791 = vmatprep.subr.mxu0 0.0
    %1792 = vmatpush1.msra.mxu0 0.0
    %1793 = vmatprep.subr.mxu0 0.0
    %1794 = vmatpush1.msra.mxu0 0.0
    %1795 = vmatprep.subr.mxu0 0.0
    %1796 = vmatpush1.msra.mxu0 0.0
    %1797 = vmatprep.subr.mxu0 0.0
    %1798 = vmatpush1.msra.mxu0 0.0
    %1799 = vmatprep.subr.mxu0 0.0
    %1800 = vmatpush1.msra.mxu0 %v665
    %1801 = vmatprep.subr.mxu0 0.0
    %1802 = vmatpush2.msra.mxu0 0.0
    %1803 = vmatprep.subr.mxu0 0.0
    %1804 = vmatpush2.msra.mxu0 0.0
    %1805 = vmatprep.subr.mxu0 0.0
    %1806 = vmatpush2.msra.mxu0 0.0
    %1807 = vmatprep.subr.mxu0 0.0
    %1808 = vmatpush2.msra.mxu0 0.0
    %1809 = vmatprep.subr.mxu0 0.0
    %1810 = vmatpush2.msra.mxu0 0.0
    %1811 = vmatprep.subr.mxu0 0.0
    %1812 = vmatpush2.msra.mxu0 0.0
    %1813 = vmatprep.subr.mxu0 0.0
    %1814 = vmatpush2.msra.mxu0 0.0
    %1815 = vmatprep.subr.mxu0 0.0
    %1816 = vmatpush2.msra.mxu0 0.0
    %1817 = vmatprep.subr.mxu0 0.0
    %1818 = vmatpush2.msra.mxu0 0.0
    %1819 = vmatprep.subr.mxu0 0.0
    %1820 = vmatpush2.msra.mxu0 0.0
    %1821 = vmatprep.subr.mxu0 0.0
    %1822 = vmatpush2.msra.mxu0 0.0
    %1823 = vmatprep.subr.mxu0 0.0
    %1824 = vmatpush2.msra.mxu0 0.0
    %1825 = vmatprep.subr.mxu0 0.0
    %1826 = vmatpush2.msra.mxu0 0.0
    %1827 = vmatprep.subr.mxu0 0.0
    %1828 = vmatpush2.msra.mxu0 0.0
    %1829 = vmatprep.subr.mxu0 0.0
    %1830 = vmatpush2.msra.mxu0 0.0
    %1831 = vmatprep.subr.mxu0 0.0
    %1832 = vmatpush2.msra.mxu0 0.0
    %1833 = vmatprep.mubr.f32.mxu0 0.0
    %1834 = vmatmul.mubr.f32.gmra.mxu0 %v1767
    %v1835 = vpop.f32.mrf.mxu0
    %v1836 = vadd.f32 0.0, %v1835
    %v1837 = vpop.f32.mrf.mxu0
    %1838 = vdwg.mxu0
    %v1840 = vsel %vm813, %v1765, 0
    %1842 = vmatprep.subr.mxu0 0.0
    %1843 = vmatpush1.msra.mxu0 0.0
    %1844 = vmatprep.subr.mxu0 0.0
    %1845 = vmatpush1.msra.mxu0 0.0
    %1846 = vmatprep.subr.mxu0 0.0
    %1847 = vmatpush1.msra.mxu0 0.0
    %1848 = vmatprep.subr.mxu0 0.0
    %1849 = vmatpush1.msra.mxu0 0.0
    %1850 = vmatprep.subr.mxu0 0.0
    %1851 = vmatpush1.msra.mxu0 0.0
    %1852 = vmatprep.subr.mxu0 0.0
    %1853 = vmatpush1.msra.mxu0 0.0
    %1854 = vmatprep.subr.mxu0 0.0
    %1855 = vmatpush1.msra.mxu0 0.0
    %1856 = vmatprep.subr.mxu0 0.0
    %1857 = vmatpush1.msra.mxu0 0.0
    %1858 = vmatprep.subr.mxu0 0.0
    %1859 = vmatpush1.msra.mxu0 0.0
    %1860 = vmatprep.subr.mxu0 0.0
    %1861 = vmatpush1.msra.mxu0 0.0
    %1862 = vmatprep.subr.mxu0 0.0
    %1863 = vmatpush1.msra.mxu0 0.0
    %1864 = vmatprep.subr.mxu0 0.0
    %1865 = vmatpush1.msra.mxu0 0.0
    %1866 = vmatprep.subr.mxu0 0.0
    %1867 = vmatpush1.msra.mxu0 0.0
    %1868 = vmatprep.subr.mxu0 0.0
    %1869 = vmatpush1.msra.mxu0 0.0
    %1870 = vmatprep.subr.mxu0 0.0
    %1871 = vmatpush1.msra.mxu0 0.0
    %1872 = vmatprep.subr.mxu0 0.0
    %1873 = vmatpush1.msra.mxu0 %v671
    %1874 = vmatprep.subr.mxu0 0.0
    %1875 = vmatpush2.msra.mxu0 0.0
    %1876 = vmatprep.subr.mxu0 0.0
    %1877 = vmatpush2.msra.mxu0 0.0
    %1878 = vmatprep.subr.mxu0 0.0
    %1879 = vmatpush2.msra.mxu0 0.0
    %1880 = vmatprep.subr.mxu0 0.0
    %1881 = vmatpush2.msra.mxu0 0.0
    %1882 = vmatprep.subr.mxu0 0.0
    %1883 = vmatpush2.msra.mxu0 0.0
    %1884 = vmatprep.subr.mxu0 0.0
    %1885 = vmatpush2.msra.mxu0 0.0
    %1886 = vmatprep.subr.mxu0 0.0
    %1887 = vmatpush2.msra.mxu0 0.0
    %1888 = vmatprep.subr.mxu0 0.0
    %1889 = vmatpush2.msra.mxu0 0.0
    %1890 = vmatprep.subr.mxu0 0.0
    %1891 = vmatpush2.msra.mxu0 0.0
    %1892 = vmatprep.subr.mxu0 0.0
    %1893 = vmatpush2.msra.mxu0 0.0
    %1894 = vmatprep.subr.mxu0 0.0
    %1895 = vmatpush2.msra.mxu0 0.0
    %1896 = vmatprep.subr.mxu0 0.0
    %1897 = vmatpush2.msra.mxu0 0.0
    %1898 = vmatprep.subr.mxu0 0.0
    %1899 = vmatpush2.msra.mxu0 0.0
    %1900 = vmatprep.subr.mxu0 0.0
    %1901 = vmatpush2.msra.mxu0 0.0
    %1902 = vmatprep.subr.mxu0 0.0
    %1903 = vmatpush2.msra.mxu0 0.0
    %1904 = vmatprep.subr.mxu0 0.0
    %1905 = vmatpush2.msra.mxu0 0.0
    %1906 = vmatprep.mubr.f32.mxu0 0.0
    %1907 = vmatmul.mubr.f32.gmra.mxu0 %v1840
    %v1908 = vpop.f32.mrf.mxu0
    %v1909 = vadd.f32 0.0, %v1908
    %v1910 = vpop.f32.mrf.mxu0
    %1911 = vdwg.mxu0
    %v1912 = vadd.f32 %v357, %v1836
    %v1913 = vadd.f32 %v363, %v1909
    %v1914 = vld [vmem:[#allocation8] sm:$0xff]
    %v1915 = vld [vmem:[#allocation8 + $0x8] sm:$0xff]
    %v1916 = vld [vmem:[#allocation8 + $0x10] sm:$0xff]
    %v1917 = vld [vmem:[#allocation8 + $0x18] sm:$0xff]
    %v1918 = vld [vmem:[#allocation8 + $0x20] sm:$0xff]
    %v1919 = vld [vmem:[#allocation8 + $0x28] sm:$0xff]
    %v1920 = vld [vmem:[#allocation8 + $0x30] sm:$0xff]
    %v1921 = vld [vmem:[#allocation8 + $0x38] sm:$0xff]
    %v1922 = vld [vmem:[#allocation8 + $0x40] sm:$0xff]
    %v1923 = vld [vmem:[#allocation8 + $0x48] sm:$0xff]
    %v1924 = vld [vmem:[#allocation8 + $0x50] sm:$0xff]
    %v1925 = vld [vmem:[#allocation8 + $0x58] sm:$0xff]
    %v1926 = vld [vmem:[#allocation8 + $0x60] sm:$0xff]
    %v1927 = vld [vmem:[#allocation8 + $0x68] sm:$0xff]
    %v1928 = vld [vmem:[#allocation8 + $0x70] sm:$0xff]
    %v1929 = vld [vmem:[#allocation8 + $0x78] sm:$0xff]
    %v1930 = vld [vmem:[#allocation8 + $0x80] sm:$0xff]
    %v1931 = vld [vmem:[#allocation8 + $0x88] sm:$0xff]
    %v1932 = vld [vmem:[#allocation8 + $0x90] sm:$0xff]
    %v1933 = vld [vmem:[#allocation8 + $0x98] sm:$0xff]
    %v1934 = vld [vmem:[#allocation8 + $0xa0] sm:$0xff]
    %v1935 = vld [vmem:[#allocation8 + $0xa8] sm:$0xff]
    %v1936 = vld [vmem:[#allocation8 + $0xb0] sm:$0xff]
    %v1937 = vld [vmem:[#allocation8 + $0xb8] sm:$0xff]
    %v1938 = vld [vmem:[#allocation8 + $0xc0] sm:$0xff]
    %v1939 = vld [vmem:[#allocation8 + $0xc8] sm:$0xff]
    %v1940 = vld [vmem:[#allocation8 + $0xd0] sm:$0xff]
    %v1941 = vld [vmem:[#allocation8 + $0xd8] sm:$0xff]
    %v1942 = vld [vmem:[#allocation8 + $0xe0] sm:$0xff]
    %v1943 = vld [vmem:[#allocation8 + $0xe8] sm:$0xff]
    %v1944 = vld [vmem:[#allocation8 + $0xf0] sm:$0xff]
    %v1945 = vld [vmem:[#allocation8 + $0xf8] sm:$0xff]
    %v1946 = vld [vmem:[#allocation8 + $0x100] sm:$0xff]
    %v1947 = vld [vmem:[#allocation8 + $0x108] sm:$0xff]
    %v1948 = vld [vmem:[#allocation8 + $0x110] sm:$0xff]
    %v1949 = vld [vmem:[#allocation8 + $0x118] sm:$0xff]
    %v1950 = vld [vmem:[#allocation8 + $0x120] sm:$0xff]
    %v1951 = vld [vmem:[#allocation8 + $0x128] sm:$0xff]
    %v1952 = vld [vmem:[#allocation8 + $0x130] sm:$0xff]
    %v1953 = vld [vmem:[#allocation8 + $0x138] sm:$0xff]
    %v1954 = vld [vmem:[#allocation8 + $0x140] sm:$0xff]
    %v1955 = vld [vmem:[#allocation8 + $0x148] sm:$0xff]
    %v1956 = vld [vmem:[#allocation8 + $0x150] sm:$0xff]
    %v1957 = vld [vmem:[#allocation8 + $0x158] sm:$0xff]
    %v1958 = vld [vmem:[#allocation8 + $0x160] sm:$0xff]
    %v1959 = vld [vmem:[#allocation8 + $0x168] sm:$0xff]
    %v1960 = vld [vmem:[#allocation8 + $0x170] sm:$0xff]
    %v1961 = vld [vmem:[#allocation8 + $0x178] sm:$0xff]
    %v1962 = vld [vmem:[#allocation8 + $0x180] sm:$0xff]
    %v1963 = vld [vmem:[#allocation8 + $0x188] sm:$0xff]
    %v1964 = vld [vmem:[#allocation8 + $0x190] sm:$0xff]
    %v1965 = vld [vmem:[#allocation8 + $0x198] sm:$0xff]
    %v1966 = vld [vmem:[#allocation8 + $0x1a0] sm:$0xff]
    %v1967 = vld [vmem:[#allocation8 + $0x1a8] sm:$0xff]
    %v1968 = vld [vmem:[#allocation8 + $0x1b0] sm:$0xff]
    %v1969 = vld [vmem:[#allocation8 + $0x1b8] sm:$0xff]
    %v1970 = vld [vmem:[#allocation8 + $0x1c0] sm:$0xff]
    %v1971 = vld [vmem:[#allocation8 + $0x1c8] sm:$0xff]
    %v1972 = vld [vmem:[#allocation8 + $0x1d0] sm:$0xff]
    %v1973 = vld [vmem:[#allocation8 + $0x1d8] sm:$0xff]
    %v1974 = vld [vmem:[#allocation8 + $0x1e0] sm:$0xff]
    %v1975 = vld [vmem:[#allocation8 + $0x1e8] sm:$0xff]
    %v1976 = vld [vmem:[#allocation8 + $0x1f0] sm:$0xff]
    %v1977 = vld [vmem:[#allocation8 + $0x1f8] sm:$0xff]
    %v1978 = vld [vmem:[#allocation10] sm:$0xff]
    %v1979 = vld [vmem:[#allocation10 + $0x8] sm:$0xff]
    %v1980 = vld [vmem:[#allocation10 + $0x10] sm:$0xff]
    %v1981 = vld [vmem:[#allocation10 + $0x18] sm:$0xff]
    %v1982 = vld [vmem:[#allocation10 + $0x20] sm:$0xff]
    %v1983 = vld [vmem:[#allocation10 + $0x28] sm:$0xff]
    %v1984 = vld [vmem:[#allocation10 + $0x30] sm:$0xff]
    %v1985 = vld [vmem:[#allocation10 + $0x38] sm:$0xff]
    %v1986 = vld [vmem:[#allocation10 + $0x40] sm:$0xff]
    %v1987 = vld [vmem:[#allocation10 + $0x48] sm:$0xff]
    %v1988 = vld [vmem:[#allocation10 + $0x50] sm:$0xff]
    %v1989 = vld [vmem:[#allocation10 + $0x58] sm:$0xff]
    %v1990 = vld [vmem:[#allocation10 + $0x60] sm:$0xff]
    %v1991 = vld [vmem:[#allocation10 + $0x68] sm:$0xff]
    %v1992 = vld [vmem:[#allocation10 + $0x70] sm:$0xff]
    %v1993 = vld [vmem:[#allocation10 + $0x78] sm:$0xff]
    %v1994 = vld [vmem:[#allocation10 + $0x80] sm:$0xff]
    %v1995 = vld [vmem:[#allocation10 + $0x88] sm:$0xff]
    %v1996 = vld [vmem:[#allocation10 + $0x90] sm:$0xff]
    %v1997 = vld [vmem:[#allocation10 + $0x98] sm:$0xff]
    %v1998 = vld [vmem:[#allocation10 + $0xa0] sm:$0xff]
    %v1999 = vld [vmem:[#allocation10 + $0xa8] sm:$0xff]
    %v2000 = vld [vmem:[#allocation10 + $0xb0] sm:$0xff]
    %v2001 = vld [vmem:[#allocation10 + $0xb8] sm:$0xff]
    %v2002 = vld [vmem:[#allocation10 + $0xc0] sm:$0xff]
    %v2003 = vld [vmem:[#allocation10 + $0xc8] sm:$0xff]
    %v2004 = vld [vmem:[#allocation10 + $0xd0] sm:$0xff]
    %v2005 = vld [vmem:[#allocation10 + $0xd8] sm:$0xff]
    %v2006 = vld [vmem:[#allocation10 + $0xe0] sm:$0xff]
    %v2007 = vld [vmem:[#allocation10 + $0xe8] sm:$0xff]
    %v2008 = vld [vmem:[#allocation10 + $0xf0] sm:$0xff]
    %v2009 = vld [vmem:[#allocation10 + $0xf8] sm:$0xff]
    %v2010 = vld [vmem:[#allocation10 + $0x100] sm:$0xff]
    %v2011 = vld [vmem:[#allocation10 + $0x108] sm:$0xff]
    %v2012 = vld [vmem:[#allocation10 + $0x110] sm:$0xff]
    %v2013 = vld [vmem:[#allocation10 + $0x118] sm:$0xff]
    %v2014 = vld [vmem:[#allocation10 + $0x120] sm:$0xff]
    %v2015 = vld [vmem:[#allocation10 + $0x128] sm:$0xff]
    %v2016 = vld [vmem:[#allocation10 + $0x130] sm:$0xff]
    %v2017 = vld [vmem:[#allocation10 + $0x138] sm:$0xff]
    %v2018 = vld [vmem:[#allocation10 + $0x140] sm:$0xff]
    %v2019 = vld [vmem:[#allocation10 + $0x148] sm:$0xff]
    %v2020 = vld [vmem:[#allocation10 + $0x150] sm:$0xff]
    %v2021 = vld [vmem:[#allocation10 + $0x158] sm:$0xff]
    %v2022 = vld [vmem:[#allocation10 + $0x160] sm:$0xff]
    %v2023 = vld [vmem:[#allocation10 + $0x168] sm:$0xff]
    %v2024 = vld [vmem:[#allocation10 + $0x170] sm:$0xff]
    %v2025 = vld [vmem:[#allocation10 + $0x178] sm:$0xff]
    %v2026 = vld [vmem:[#allocation10 + $0x180] sm:$0xff]
    %v2027 = vld [vmem:[#allocation10 + $0x188] sm:$0xff]
    %v2028 = vld [vmem:[#allocation10 + $0x190] sm:$0xff]
    %v2029 = vld [vmem:[#allocation10 + $0x198] sm:$0xff]
    %v2030 = vld [vmem:[#allocation10 + $0x1a0] sm:$0xff]
    %v2031 = vld [vmem:[#allocation10 + $0x1a8] sm:$0xff]
    %v2032 = vld [vmem:[#allocation10 + $0x1b0] sm:$0xff]
    %v2033 = vld [vmem:[#allocation10 + $0x1b8] sm:$0xff]
    %v2034 = vld [vmem:[#allocation10 + $0x1c0] sm:$0xff]
    %v2035 = vld [vmem:[#allocation10 + $0x1c8] sm:$0xff]
    %v2036 = vld [vmem:[#allocation10 + $0x1d0] sm:$0xff]
    %v2037 = vld [vmem:[#allocation10 + $0x1d8] sm:$0xff]
    %v2038 = vld [vmem:[#allocation10 + $0x1e0] sm:$0xff]
    %v2039 = vld [vmem:[#allocation10 + $0x1e8] sm:$0xff]
    %v2040 = vld [vmem:[#allocation10 + $0x1f0] sm:$0xff]
    %v2041 = vld [vmem:[#allocation10 + $0x1f8] sm:$0xff]
    %v2042 = vld [vmem:[%s5] sm:$0x1]
    %v2044 = vlaneseq
    %v2045 = vshrl.u32 %v2044, 7
    %v2046 = vsub.s32 0, %v2045
    %v2047 = vrot.slane %v2042, %v2046
    %2049 = vmatprep.subr.mxu0 0.0
    %2050 = vmatpush1.msra.mxu0 %v1993
    %2051 = vmatprep.subr.mxu0 0.0
    %2052 = vmatpush1.msra.mxu0 %v1992
    %2053 = vmatprep.subr.mxu0 0.0
    %2054 = vmatpush1.msra.mxu0 %v1991
    %2055 = vmatprep.subr.mxu0 0.0
    %2056 = vmatpush1.msra.mxu0 %v1990
    %2057 = vmatprep.subr.mxu0 0.0
    %2058 = vmatpush1.msra.mxu0 %v1989
    %2059 = vmatprep.subr.mxu0 0.0
    %2060 = vmatpush1.msra.mxu0 %v1988
    %2061 = vmatprep.subr.mxu0 0.0
    %2062 = vmatpush1.msra.mxu0 %v1987
    %2063 = vmatprep.subr.mxu0 0.0
    %2064 = vmatpush1.msra.mxu0 %v1986
    %2065 = vmatprep.subr.mxu0 0.0
    %2066 = vmatpush1.msra.mxu0 %v1985
    %2067 = vmatprep.subr.mxu0 0.0
    %2068 = vmatpush1.msra.mxu0 %v1984
    %2069 = vmatprep.subr.mxu0 0.0
    %2070 = vmatpush1.msra.mxu0 %v1983
    %2071 = vmatprep.subr.mxu0 0.0
    %2072 = vmatpush1.msra.mxu0 %v1982
    %2073 = vmatprep.subr.mxu0 0.0
    %2074 = vmatpush1.msra.mxu0 %v1981
    %2075 = vmatprep.subr.mxu0 0.0
    %2076 = vmatpush1.msra.mxu0 %v1980
    %2077 = vmatprep.subr.mxu0 0.0
    %2078 = vmatpush1.msra.mxu0 %v1979
    %2079 = vmatprep.subr.mxu0 0.0
    %2080 = vmatpush1.msra.mxu0 %v1978
    %2081 = vmatprep.subr.mxu0 0.0
    %2082 = vmatpush2.msra.mxu0 %v2009
    %2083 = vmatprep.subr.mxu0 0.0
    %2084 = vmatpush2.msra.mxu0 %v2008
    %2085 = vmatprep.subr.mxu0 0.0
    %2086 = vmatpush2.msra.mxu0 %v2007
    %2087 = vmatprep.subr.mxu0 0.0
    %2088 = vmatpush2.msra.mxu0 %v2006
    %2089 = vmatprep.subr.mxu0 0.0
    %2090 = vmatpush2.msra.mxu0 %v2005
    %2091 = vmatprep.subr.mxu0 0.0
    %2092 = vmatpush2.msra.mxu0 %v2004
    %2093 = vmatprep.subr.mxu0 0.0
    %2094 = vmatpush2.msra.mxu0 %v2003
    %2095 = vmatprep.subr.mxu0 0.0
    %2096 = vmatpush2.msra.mxu0 %v2002
    %2097 = vmatprep.subr.mxu0 0.0
    %2098 = vmatpush2.msra.mxu0 %v2001
    %2099 = vmatprep.subr.mxu0 0.0
    %2100 = vmatpush2.msra.mxu0 %v2000
    %2101 = vmatprep.subr.mxu0 0.0
    %2102 = vmatpush2.msra.mxu0 %v1999
    %2103 = vmatprep.subr.mxu0 0.0
    %2104 = vmatpush2.msra.mxu0 %v1998
    %2105 = vmatprep.subr.mxu0 0.0
    %2106 = vmatpush2.msra.mxu0 %v1997
    %2107 = vmatprep.subr.mxu0 0.0
    %2108 = vmatpush2.msra.mxu0 %v1996
    %2109 = vmatprep.subr.mxu0 0.0
    %2110 = vmatpush2.msra.mxu0 %v1995
    %2111 = vmatprep.subr.mxu0 0.0
    %2112 = vmatpush2.msra.mxu0 %v1994
    %2113 = vmatprep.mubr.f32.mxu0 %v1292
    %2114 = vmatmul.mubr.f32.gmra.mxu0 %v982
    %v2115 = vpop.f32.mrf.mxu0
    %v2116 = vadd.f32 %v2047, %v2115
    %v2117 = vpop.f32.mrf.mxu0
    %2118 = vmatprep.mubr.f32.mxu0 %v1293
    %2119 = vmatmul.mubr.f32.gmra.mxu0 %v983
    %v2120 = vpop.f32.mrf.mxu0
    %v2121 = vadd.f32 %v2047, %v2120
    %v2122 = vpop.f32.mrf.mxu0
    %2123 = vdwg.mxu0
    %2124 = vmatprep.subr.mxu0 0.0
    %2125 = vmatpush1.msra.mxu0 %v2025
    %2126 = vmatprep.subr.mxu0 0.0
    %2127 = vmatpush1.msra.mxu0 %v2024
    %2128 = vmatprep.subr.mxu0 0.0
    %2129 = vmatpush1.msra.mxu0 %v2023
    %2130 = vmatprep.subr.mxu0 0.0
    %2131 = vmatpush1.msra.mxu0 %v2022
    %2132 = vmatprep.subr.mxu0 0.0
    %2133 = vmatpush1.msra.mxu0 %v2021
    %2134 = vmatprep.subr.mxu0 0.0
    %2135 = vmatpush1.msra.mxu0 %v2020
    %2136 = vmatprep.subr.mxu0 0.0
    %2137 = vmatpush1.msra.mxu0 %v2019
    %2138 = vmatprep.subr.mxu0 0.0
    %2139 = vmatpush1.msra.mxu0 %v2018
    %2140 = vmatprep.subr.mxu0 0.0
    %2141 = vmatpush1.msra.mxu0 %v2017
    %2142 = vmatprep.subr.mxu0 0.0
    %2143 = vmatpush1.msra.mxu0 %v2016
    %2144 = vmatprep.subr.mxu0 0.0
    %2145 = vmatpush1.msra.mxu0 %v2015
    %2146 = vmatprep.subr.mxu0 0.0
    %2147 = vmatpush1.msra.mxu0 %v2014
    %2148 = vmatprep.subr.mxu0 0.0
    %2149 = vmatpush1.msra.mxu0 %v2013
    %2150 = vmatprep.subr.mxu0 0.0
    %2151 = vmatpush1.msra.mxu0 %v2012
    %2152 = vmatprep.subr.mxu0 0.0
    %2153 = vmatpush1.msra.mxu0 %v2011
    %2154 = vmatprep.subr.mxu0 0.0
    %2155 = vmatpush1.msra.mxu0 %v2010
    %2156 = vmatprep.subr.mxu0 0.0
    %2157 = vmatpush2.msra.mxu0 %v2041
    %2158 = vmatprep.subr.mxu0 0.0
    %2159 = vmatpush2.msra.mxu0 %v2040
    %2160 = vmatprep.subr.mxu0 0.0
    %2161 = vmatpush2.msra.mxu0 %v2039
    %2162 = vmatprep.subr.mxu0 0.0
    %2163 = vmatpush2.msra.mxu0 %v2038
    %2164 = vmatprep.subr.mxu0 0.0
    %2165 = vmatpush2.msra.mxu0 %v2037
    %2166 = vmatprep.subr.mxu0 0.0
    %2167 = vmatpush2.msra.mxu0 %v2036
    %2168 = vmatprep.subr.mxu0 0.0
    %2169 = vmatpush2.msra.mxu0 %v2035
    %2170 = vmatprep.subr.mxu0 0.0
    %2171 = vmatpush2.msra.mxu0 %v2034
    %2172 = vmatprep.subr.mxu0 0.0
    %2173 = vmatpush2.msra.mxu0 %v2033
    %2174 = vmatprep.subr.mxu0 0.0
    %2175 = vmatpush2.msra.mxu0 %v2032
    %2176 = vmatprep.subr.mxu0 0.0
    %2177 = vmatpush2.msra.mxu0 %v2031
    %2178 = vmatprep.subr.mxu0 0.0
    %2179 = vmatpush2.msra.mxu0 %v2030
    %2180 = vmatprep.subr.mxu0 0.0
    %2181 = vmatpush2.msra.mxu0 %v2029
    %2182 = vmatprep.subr.mxu0 0.0
    %2183 = vmatpush2.msra.mxu0 %v2028
    %2184 = vmatprep.subr.mxu0 0.0
    %2185 = vmatpush2.msra.mxu0 %v2027
    %2186 = vmatprep.subr.mxu0 0.0
    %2187 = vmatpush2.msra.mxu0 %v2026
    %2188 = vmatprep.mubr.f32.mxu0 %v1912
    %2189 = vmatmul.mubr.f32.gmra.mxu0 %v1602
    %v2190 = vpop.f32.mrf.mxu0
    %v2191 = vadd.f32 %v2116, %v2190
    %v2192 = vpop.f32.mrf.mxu0
    %2193 = vmatprep.mubr.f32.mxu0 %v1913
    %2194 = vmatmul.mubr.f32.gmra.mxu0 %v1603
    %v2195 = vpop.f32.mrf.mxu0
    %v2196 = vadd.f32 %v2121, %v2195
    %v2197 = vpop.f32.mrf.mxu0
    %2198 = vdwg.mxu0
    %v2199 = vmax.f32 %v2191, 0.0
    %v2200 = vmax.f32 %v2196, 0.0
    %2201 = vmatprep.subr.mxu0 0.0
    %2202 = vmatpush1.msra.mxu0 %v1929
    %2203 = vmatprep.subr.mxu0 0.0
    %2204 = vmatpush1.msra.mxu0 %v1928
    %2205 = vmatprep.subr.mxu0 0.0
    %2206 = vmatpush1.msra.mxu0 %v1927
    %2207 = vmatprep.subr.mxu0 0.0
    %2208 = vmatpush1.msra.mxu0 %v1926
    %2209 = vmatprep.subr.mxu0 0.0
    %2210 = vmatpush1.msra.mxu0 %v1925
    %2211 = vmatprep.subr.mxu0 0.0
    %2212 = vmatpush1.msra.mxu0 %v1924
    %2213 = vmatprep.subr.mxu0 0.0
    %2214 = vmatpush1.msra.mxu0 %v1923
    %2215 = vmatprep.subr.mxu0 0.0
    %2216 = vmatpush1.msra.mxu0 %v1922
    %2217 = vmatprep.subr.mxu0 0.0
    %2218 = vmatpush1.msra.mxu0 %v1921
    %2219 = vmatprep.subr.mxu0 0.0
    %2220 = vmatpush1.msra.mxu0 %v1920
    %2221 = vmatprep.subr.mxu0 0.0
    %2222 = vmatpush1.msra.mxu0 %v1919
    %2223 = vmatprep.subr.mxu0 0.0
    %2224 = vmatpush1.msra.mxu0 %v1918
    %2225 = vmatprep.subr.mxu0 0.0
    %2226 = vmatpush1.msra.mxu0 %v1917
    %2227 = vmatprep.subr.mxu0 0.0
    %2228 = vmatpush1.msra.mxu0 %v1916
    %2229 = vmatprep.subr.mxu0 0.0
    %2230 = vmatpush1.msra.mxu0 %v1915
    %2231 = vmatprep.subr.mxu0 0.0
    %2232 = vmatpush1.msra.mxu0 %v1914
    %2233 = vmatprep.subr.mxu0 0.0
    %2234 = vmatpush2.msra.mxu0 %v1945
    %2235 = vmatprep.subr.mxu0 0.0
    %2236 = vmatpush2.msra.mxu0 %v1944
    %2237 = vmatprep.subr.mxu0 0.0
    %2238 = vmatpush2.msra.mxu0 %v1943
    %2239 = vmatprep.subr.mxu0 0.0
    %2240 = vmatpush2.msra.mxu0 %v1942
    %2241 = vmatprep.subr.mxu0 0.0
    %2242 = vmatpush2.msra.mxu0 %v1941
    %2243 = vmatprep.subr.mxu0 0.0
    %2244 = vmatpush2.msra.mxu0 %v1940
    %2245 = vmatprep.subr.mxu0 0.0
    %2246 = vmatpush2.msra.mxu0 %v1939
    %2247 = vmatprep.subr.mxu0 0.0
    %2248 = vmatpush2.msra.mxu0 %v1938
    %2249 = vmatprep.subr.mxu0 0.0
    %2250 = vmatpush2.msra.mxu0 %v1937
    %2251 = vmatprep.subr.mxu0 0.0
    %2252 = vmatpush2.msra.mxu0 %v1936
    %2253 = vmatprep.subr.mxu0 0.0
    %2254 = vmatpush2.msra.mxu0 %v1935
    %2255 = vmatprep.subr.mxu0 0.0
    %2256 = vmatpush2.msra.mxu0 %v1934
    %2257 = vmatprep.subr.mxu0 0.0
    %2258 = vmatpush2.msra.mxu0 %v1933
    %2259 = vmatprep.subr.mxu0 0.0
    %2260 = vmatpush2.msra.mxu0 %v1932
    %2261 = vmatprep.subr.mxu0 0.0
    %2262 = vmatpush2.msra.mxu0 %v1931
    %2263 = vmatprep.subr.mxu0 0.0
    %2264 = vmatpush2.msra.mxu0 %v1930
    %2265 = vmatprep.mubr.f32.mxu0 %v1292
    %2266 = vmatmul.mubr.f32.gmra.mxu0 %v982
    %v2267 = vpop.f32.mrf.mxu0
    %v2268 = vadd.f32 %v2199, %v2267
    %v2269 = vpop.f32.mrf.mxu0
    %2270 = vmatprep.mubr.f32.mxu0 %v1293
    %2271 = vmatmul.mubr.f32.gmra.mxu0 %v983
    %v2272 = vpop.f32.mrf.mxu0
    %v2273 = vadd.f32 %v2200, %v2272
    %v2274 = vpop.f32.mrf.mxu0
    %2275 = vdwg.mxu0
    %2276 = vmatprep.subr.mxu0 0.0
    %2277 = vmatpush1.msra.mxu0 %v1961
    %2278 = vmatprep.subr.mxu0 0.0
    %2279 = vmatpush1.msra.mxu0 %v1960
    %2280 = vmatprep.subr.mxu0 0.0
    %2281 = vmatpush1.msra.mxu0 %v1959
    %2282 = vmatprep.subr.mxu0 0.0
    %2283 = vmatpush1.msra.mxu0 %v1958
    %2284 = vmatprep.subr.mxu0 0.0
    %2285 = vmatpush1.msra.mxu0 %v1957
    %2286 = vmatprep.subr.mxu0 0.0
    %2287 = vmatpush1.msra.mxu0 %v1956
    %2288 = vmatprep.subr.mxu0 0.0
    %2289 = vmatpush1.msra.mxu0 %v1955
    %2290 = vmatprep.subr.mxu0 0.0
    %2291 = vmatpush1.msra.mxu0 %v1954
    %2292 = vmatprep.subr.mxu0 0.0
    %2293 = vmatpush1.msra.mxu0 %v1953
    %2294 = vmatprep.subr.mxu0 0.0
    %2295 = vmatpush1.msra.mxu0 %v1952
    %2296 = vmatprep.subr.mxu0 0.0
    %2297 = vmatpush1.msra.mxu0 %v1951
    %2298 = vmatprep.subr.mxu0 0.0
    %2299 = vmatpush1.msra.mxu0 %v1950
    %2300 = vmatprep.subr.mxu0 0.0
    %2301 = vmatpush1.msra.mxu0 %v1949
    %2302 = vmatprep.subr.mxu0 0.0
    %2303 = vmatpush1.msra.mxu0 %v1948
    %2304 = vmatprep.subr.mxu0 0.0
    %2305 = vmatpush1.msra.mxu0 %v1947
    %2306 = vmatprep.subr.mxu0 0.0
    %2307 = vmatpush1.msra.mxu0 %v1946
    %2308 = vmatprep.subr.mxu0 0.0
    %2309 = vmatpush2.msra.mxu0 %v1977
    %2310 = vmatprep.subr.mxu0 0.0
    %2311 = vmatpush2.msra.mxu0 %v1976
    %2312 = vmatprep.subr.mxu0 0.0
    %2313 = vmatpush2.msra.mxu0 %v1975
    %2314 = vmatprep.subr.mxu0 0.0
    %2315 = vmatpush2.msra.mxu0 %v1974
    %2316 = vmatprep.subr.mxu0 0.0
    %2317 = vmatpush2.msra.mxu0 %v1973
    %2318 = vmatprep.subr.mxu0 0.0
    %2319 = vmatpush2.msra.mxu0 %v1972
    %2320 = vmatprep.subr.mxu0 0.0
    %2321 = vmatpush2.msra.mxu0 %v1971
    %2322 = vmatprep.subr.mxu0 0.0
    %2323 = vmatpush2.msra.mxu0 %v1970
    %2324 = vmatprep.subr.mxu0 0.0
    %2325 = vmatpush2.msra.mxu0 %v1969
    %2326 = vmatprep.subr.mxu0 0.0
    %2327 = vmatpush2.msra.mxu0 %v1968
    %2328 = vmatprep.subr.mxu0 0.0
    %2329 = vmatpush2.msra.mxu0 %v1967
    %2330 = vmatprep.subr.mxu0 0.0
    %2331 = vmatpush2.msra.mxu0 %v1966
    %2332 = vmatprep.subr.mxu0 0.0
    %2333 = vmatpush2.msra.mxu0 %v1965
    %2334 = vmatprep.subr.mxu0 0.0
    %2335 = vmatpush2.msra.mxu0 %v1964
    %2336 = vmatprep.subr.mxu0 0.0
    %2337 = vmatpush2.msra.mxu0 %v1963
    %2338 = vmatprep.subr.mxu0 0.0
    %2339 = vmatpush2.msra.mxu0 %v1962
    %2340 = vmatprep.mubr.f32.mxu0 %v1912
    %2341 = vmatmul.mubr.f32.gmra.mxu0 %v1602
    %v2342 = vpop.f32.mrf.mxu0
    %v2343 = vadd.f32 %v2268, %v2342
    %v2344 = vpop.f32.mrf.mxu0
    %2345 = vmatprep.mubr.f32.mxu0 %v1913
    %2346 = vmatmul.mubr.f32.gmra.mxu0 %v1603
    %v2347 = vpop.f32.mrf.mxu0
    %v2348 = vadd.f32 %v2273, %v2347
    %v2349 = vpop.f32.mrf.mxu0
    %2350 = vdwg.mxu0
    %2351 = vst [vmem:[#allocation11] sm:$0xff] %v2343
    %2352 = vst [vmem:[#allocation11 + $0x8] sm:$0xff] %v2348
    // Predicated region
    $region46: #{tpu_custom_call.1} parent=1 // pred_check
      _
    $region47: #{tpu_custom_call.1} parent=1 // pred_check_branch
      %2354 = sbr.rel (0) target = $region49
    $region48: #{tpu_custom_call.1} parent=1 // pred_region
      %s2356 = ssub.s32 256, 256
      %2357 = vsyncadd [#allocation4], %s2356
      %s2358 = sshll.u32 [#allocation11], 4
      %s2359 = int_to_ptr.vmem [resolvable:$true] %s2358
      %2364 = dma.vmem_to_hbm [thread:$0]  %s2359, 256, %s6, [#allocation4], 128, 128, 8
    $region49: #{tpu_custom_call.1} parent=1 // pred_fallthru
      _
    // Predicated region
    $region50: #{tpu_custom_call.1} parent=1 // pred_check
      _
    $region51: #{tpu_custom_call.1} parent=1 // pred_check_branch
      %2366 = sbr.rel (0) target = $region53
    $region52: #{tpu_custom_call.1} parent=1 // pred_region
      %2367 = dma.done [#allocation4], 256
    $region53: #{tpu_custom_call.1} parent=1 // pred_fallthru
      _
    %2368 = vsyncpa [#allocation3], 1
    %2369 = vsyncpa [#allocation6], 1
    %2370 = vsyncpa [#allocation9], 1
    %2371 = vsyncpa [#allocation4], 1

</llo_original>
